<compile_context>
chip_gen: v6e
topology: v6e:2x2x1
jax: 0.10.0
libtpu: 0.0.40
codegen_flags: <defaults>
</compile_context>

<pallas_src>
import functools
import math

import jax
import jax.numpy as jnp
from jax.experimental import pallas as pl
from jax.experimental.pallas import tpu as pltpu


def _ln_normalize_f32(x, eps=1e-5):
    """LayerNorm normalization only (mean/var, fp32). The affine (gamma/beta)
    is folded into the downstream projection weights host-side."""
    xf = x.astype(jnp.float32)
    mu = jnp.mean(xf, axis=-1, keepdims=True)
    var = jnp.mean(jnp.square(xf - mu), axis=-1, keepdims=True)
    return (xf - mu) * jax.lax.rsqrt(var + eps)


def residual_attention_block_kernel(
    x_ref,                     # (B, S, D)  f32
    w_qkv_ref, b_qkv_ref,      # (D, 3D) bf16 (pre-T, LN1 + q-scale folded), (1, 3D) f32
    w_out_ref, b_out_ref,      # (D, D)  bf16 (pre-T), (1, D) f32
    w_fc_ref, b_fc_ref,        # (D, 4D) bf16 (pre-T, LN2 folded), (1, 4D) f32
    w_proj_ref, b_proj_ref,    # (4D, D) bf16 (pre-T), (1, D) f32
    o_ref,                     # (B, S, D) f32
    *, n_head,
):
    B, S, D = x_ref.shape
    Hd = D // n_head
    R = B * S

    x = x_ref[...].reshape(R, D)                       # (R, D) f32, rows = (b, s)

    # ---------------- attention branch ----------------
    xn = _ln_normalize_f32(x).astype(jnp.bfloat16)     # LN1 affine folded into w_qkv

    qkv = (jnp.dot(xn, w_qkv_ref[...], preferred_element_type=jnp.float32)
           + b_qkv_ref[...])                           # (R, 3D) f32

    # 128-aligned lane slices, single bf16 cast per tensor.
    qq = qkv[:, 0 * D:1 * D].astype(jnp.bfloat16)
    kk = qkv[:, 1 * D:2 * D].astype(jnp.bfloat16)
    vv = qkv[:, 2 * D:3 * D].astype(jnp.bfloat16)

    def heads(t):                                      # (R, D) -> (H*B, S, Hd)
        parts = []
        for h in range(n_head):
            th = t[:, h * Hd:(h + 1) * Hd]             # lane slice (R, Hd)
            for b in range(B):
                parts.append(th[b * S:(b + 1) * S, :]) # sublane slice (S, Hd), free
        return jnp.stack(parts, axis=0)                # batch axis ordered (h, b)
        # TODO(synk): replace with a single lane-split relayout per tensor
        # (pltpu.einshape) once verified to lower on all TPU generations.

    q3, k3, v3 = heads(qq), heads(kk), heads(vv)       # (H*B, S, Hd) bf16

    s = jnp.einsum('nqd,nkd->nqk', q3, k3,
                   preferred_element_type=jnp.float32) # (H*B, S, S) f32
    s = s - jnp.max(s, axis=-1, keepdims=True)
    p = jnp.exp(s)
    p = p * pl.reciprocal(jnp.sum(p, axis=-1, keepdims=True), approx=True)
    ctx = jnp.einsum('nqk,nkd->nqd', p.astype(jnp.bfloat16), v3,
                     preferred_element_type=jnp.float32)  # (H*B, S, Hd) f32

    # Head recombination fused into out_proj: per-head partial matmuls
    # accumulate into an f32 register accumulator (no masked 32-lane stores,
    # no VMEM scratch; every matmul output is 128-lane dense).
    w_out = w_out_ref[...]                             # (D, D) bf16, loaded once
    attn = jnp.zeros((R, D), jnp.float32)
    for h in range(n_head):
        ctx_h = ctx[h * B:(h + 1) * B].reshape(R, Hd).astype(jnp.bfloat16)
        attn = attn + jnp.dot(ctx_h, w_out[h * Hd:(h + 1) * Hd, :],
                              preferred_element_type=jnp.float32)
    attn = attn + b_out_ref[...]
    x1 = x + attn

    # ---------------- MLP branch ----------------
    x1n = _ln_normalize_f32(x1).astype(jnp.bfloat16)   # LN2 affine folded into w_fc
    h_fc = (jnp.dot(x1n, w_fc_ref[...], preferred_element_type=jnp.float32)
            + b_fc_ref[...])                           # (R, 4D) f32
    h_fc = h_fc * jax.nn.sigmoid(1.702 * h_fc)         # QuickGELU (f32)
    y = (jnp.dot(h_fc.astype(jnp.bfloat16), w_proj_ref[...],
                 preferred_element_type=jnp.float32) + b_proj_ref[...])

    o_ref[...] = (x1 + y).reshape(B, S, D).astype(o_ref.dtype)


def _full_spec(shape):
    zeros = (0,) * len(shape)
    return pl.BlockSpec(shape, lambda i, _z=zeros: _z)


def prepare_params(p, n_head):
    """One-time host-side weight prep (hoisted out of the per-call forward):
      * transpose every Linear weight to (in, out) and cast to bf16,
      * fold LN1 gamma/beta and the 1/sqrt(head_dim) q-scale into in_proj,
      * fold LN2 gamma/beta into c_fc,
      * biases stay fp32, shaped (1, out)."""
    D = p["w_out"].shape[0]
    Hd = D // n_head
    scale = 1.0 / math.sqrt(Hd)
    f32 = jnp.float32

    # in_proj: W' = diag(ln1_w) @ W^T, b' = b + ln1_b @ W^T, then q-columns scaled.
    wt = p["w_qkv"].astype(f32).T                                  # (D, 3D)
    bq = p["b_qkv"].astype(f32) + p["ln1_b"].astype(f32) @ wt
    wt = p["ln1_w"].astype(f32)[:, None] * wt
    colscale = jnp.concatenate([jnp.full((D,), scale, f32), jnp.ones((2 * D,), f32)])
    wt = wt * colscale[None, :]
    bq = bq * colscale

    # c_fc: fold LN2 the same way.
    wf = p["w_fc"].astype(f32).T                                   # (D, 4D)
    bf = p["b_fc"].astype(f32) + p["ln2_b"].astype(f32) @ wf
    wf = p["ln2_w"].astype(f32)[:, None] * wf

    return {
        "w_qkv": wt.astype(jnp.bfloat16),                          # (D, 3D)
        "b_qkv": bq.reshape(1, 3 * D),
        "w_out": p["w_out"].astype(f32).T.astype(jnp.bfloat16),    # (D, D)
        "b_out": p["b_out"].astype(f32).reshape(1, D),
        "w_fc": wf.astype(jnp.bfloat16),                           # (D, 4D)
        "b_fc": bf.reshape(1, 4 * D),
        "w_proj": p["w_proj"].astype(f32).T.astype(jnp.bfloat16),  # (4D, D)
        "b_proj": p["b_proj"].astype(f32).reshape(1, D),
    }


@functools.partial(jax.jit, static_argnames=("n_head",))
def residual_attention_block(x_bsd, prepped, n_head):
    """Forward pass. x_bsd: (B, S, D) float32 (batch-first; transpose once from
    PyTorch's (S, B, D) MultiheadAttention layout outside the hot path)."""
    B, S, D = x_bsd.shape
    assert D % n_head == 0 and D % 128 == 0 and S % 8 == 0, (B, S, D, n_head)
    R = B * S
    H = n_head

    flat_params = [prepped[k] for k in ("w_qkv", "b_qkv", "w_out", "b_out",
                                        "w_fc", "b_fc", "w_proj", "b_proj")]

    # ---- cost estimate + explicit VMEM budget (clamped to the chip) ----
    flops = 24 * R * D * D + 4 * B * S * S * D
    transcendentals = B * H * S * S + R * 4 * D + 2 * R
    weight_bytes = sum(int(w.size) * w.dtype.itemsize for w in flat_params)
    bytes_accessed = 2 * R * D * 4 + weight_bytes
    cost = pl.CostEstimate(flops=flops, transcendentals=transcendentals,
                           bytes_accessed=bytes_accessed)

    act_bytes = 4 * R * (3 * D + 3 * D + 4 * D + 4 * D) + 4 * H * B * S * S
    need = 2 * (2 * R * D * 4) + 2 * weight_bytes + 3 * act_bytes
    try:
        vmem_cap = int(pltpu.get_tpu_info().vmem_capacity_bytes)
    except Exception:
        vmem_cap = 64 * 2 ** 20                       # v7x per-core floor
    vmem_limit_bytes = int(min(max(32 * 2 ** 20, 2 * need), vmem_cap - 2 * 2 ** 20))

    # Single grid step: batch is folded into the token axis inside the kernel,
    # so the weights are DMA'd exactly once and the MXU sees B*S rows / matmul.
    grid_spec = pltpu.PrefetchScalarGridSpec(
        num_scalar_prefetch=0,
        grid=(1,),
        in_specs=[pl.BlockSpec((B, S, D), lambda i: (0, 0, 0))]
                 + [_full_spec(w.shape) for w in flat_params],
        out_specs=pl.BlockSpec((B, S, D), lambda i: (0, 0, 0)),
    )

    return pl.pallas_call(
        functools.partial(residual_attention_block_kernel, n_head=n_head),
        out_shape=jax.ShapeDtypeStruct((B, S, D), x_bsd.dtype),
        grid_spec=grid_spec,
        compiler_params=pltpu.CompilerParams(
            dimension_semantics=("arbitrary",),
            vmem_limit_bytes=vmem_limit_bytes),
        cost_estimate=cost,
    )(x_bsd, *flat_params)


def reference_forward(x_bsd, p, n_head):
    """Pure-JAX fp32 reference with the exact PyTorch module semantics."""
    B, S, D = x_bsd.shape
    Hd = D // n_head

    def ln(x, w, b, eps=1e-5):
        mu = jnp.mean(x, -1, keepdims=True)
        var = jnp.mean(jnp.square(x - mu), -1, keepdims=True)
        return (x - mu) * jax.lax.rsqrt(var + eps) * w + b

    xn = ln(x_bsd, p["ln1_w"], p["ln1_b"])
    qkv = xn @ p["w_qkv"].T + p["b_qkv"]
    q, k, v = qkv[..., :D], qkv[..., D:2 * D], qkv[..., 2 * D:]
    split = lambda t: t.reshape(B, S, n_head, Hd).transpose(0, 2, 1, 3)
    q, k, v = split(q), split(k), split(v)
    s = jnp.einsum('bhqd,bhkd->bhqk', q, k) / math.sqrt(Hd)
    a = jax.nn.softmax(s, axis=-1)
    ctx = jnp.einsum('bhqk,bhkd->bhqd', a, v).transpose(0, 2, 1, 3).reshape(B, S, D)
    x1 = x_bsd + ctx @ p["w_out"].T + p["b_out"]
    h = ln(x1, p["ln2_w"], p["ln2_b"]) @ p["w_fc"].T + p["b_fc"]
    h = h * jax.nn.sigmoid(1.702 * h)
    return x1 + h @ p["w_proj"].T + p["b_proj"]


def init_params(key, d_model):
    """Deterministic synthetic parameters (PyTorch module shapes/layouts)."""
    ks = jax.random.split(key, 12)
    s = 0.02
    D = d_model
    return {
        "ln1_w": 1.0 + 0.1 * jax.random.normal(ks[0], (D,), jnp.float32),
        "ln1_b": 0.05 * jax.random.normal(ks[1], (D,), jnp.float32),
        # nn.MultiheadAttention: in_proj_weight (3D, D), in_proj_bias (3D,)
        "w_qkv": s * jax.random.normal(ks[2], (3 * D, D), jnp.float32),
        "b_qkv": s * jax.random.normal(ks[3], (3 * D,), jnp.float32),
        # out_proj: (D, D), (D,)
        "w_out": s * jax.random.normal(ks[4], (D, D), jnp.float32),
        "b_out": s * jax.random.normal(ks[5], (D,), jnp.float32),
        "ln2_w": 1.0 + 0.1 * jax.random.normal(ks[6], (D,), jnp.float32),
        "ln2_b": 0.05 * jax.random.normal(ks[7], (D,), jnp.float32),
        # mlp.c_fc: (4D, D), (4D,) ; mlp.c_proj: (D, 4D), (D,)
        "w_fc": s * jax.random.normal(ks[8], (4 * D, D), jnp.float32),
        "b_fc": s * jax.random.normal(ks[9], (4 * D,), jnp.float32),
        "w_proj": s * jax.random.normal(ks[10], (D, 4 * D), jnp.float32),
        "b_proj": s * jax.random.normal(ks[11], (D,), jnp.float32),
    }


if __name__ == "__main__":
    # batch, seq, d_model, n_head — D=128 keeps every matmul output lane-dense.
    B, S, D, H = 2, 16, 128, 4

    key = jax.random.PRNGKey(0)
    kx, kp = jax.random.split(key)
    x = jax.random.normal(kx, (B, S, D), jnp.float32)   # batch-first (B, S, D)
    params = init_params(kp, D)
    prepped = prepare_params(params, n_head=H)          # one-time host-side prep

    out = residual_attention_block(x, prepped, n_head=H)
    out = jax.block_until_ready(out)
    assert out.shape == (B, S, D) and out.dtype == jnp.float32

    # bf16 matmuls + approx reciprocal => validate against fp32 reference with
    # a documented tolerance instead of expecting a bit-match.
    ref = reference_forward(x, params, H)
    err = float(jnp.max(jnp.abs(out - ref)))
    assert err < 5e-2, f"kernel vs fp32 reference max|diff|={err}"

    print("KERNEL_OK")
</pallas_src>

<mosaic_0001>
module attributes {stable_mosaic.version = 11 : i64} {
  func.func @residual_attention_block_kernel(%arg0: i32, %arg1: memref<2x16x128xf32, #tpu.memory_space<vmem>>, %arg2: memref<128x384xbf16, #tpu.memory_space<vmem>>, %arg3: memref<1x384xf32, #tpu.memory_space<vmem>>, %arg4: memref<128x128xbf16, #tpu.memory_space<vmem>>, %arg5: memref<1x128xf32, #tpu.memory_space<vmem>>, %arg6: memref<128x512xbf16, #tpu.memory_space<vmem>>, %arg7: memref<1x512xf32, #tpu.memory_space<vmem>>, %arg8: memref<512x128xbf16, #tpu.memory_space<vmem>>, %arg9: memref<1x128xf32, #tpu.memory_space<vmem>>, %arg10: memref<2x16x128xf32, #tpu.memory_space<vmem>>) attributes {dimension_semantics = [#tpu.dimension_semantics<arbitrary>], iteration_bounds = array<i64: 1>, scalar_prefetch = 0 : i64, scratch_operands = 0 : i64, tpu.core_type = #tpu.core_type<tc>, window_params = [{pipeline_mode = #tpu.pipeline_mode<synchronous>, transform_indices = @transform_0, window_bounds = array<i64: 2, 16, 128>}, {pipeline_mode = #tpu.pipeline_mode<synchronous>, transform_indices = @transform_1, window_bounds = array<i64: 128, 384>}, {pipeline_mode = #tpu.pipeline_mode<synchronous>, transform_indices = @transform_2, window_bounds = array<i64: 1, 384>}, {pipeline_mode = #tpu.pipeline_mode<synchronous>, transform_indices = @transform_3, window_bounds = array<i64: 128, 128>}, {pipeline_mode = #tpu.pipeline_mode<synchronous>, transform_indices = @transform_4, window_bounds = array<i64: 1, 128>}, {pipeline_mode = #tpu.pipeline_mode<synchronous>, transform_indices = @transform_5, window_bounds = array<i64: 128, 512>}, {pipeline_mode = #tpu.pipeline_mode<synchronous>, transform_indices = @transform_6, window_bounds = array<i64: 1, 512>}, {pipeline_mode = #tpu.pipeline_mode<synchronous>, transform_indices = @transform_7, window_bounds = array<i64: 512, 128>}, {pipeline_mode = #tpu.pipeline_mode<synchronous>, transform_indices = @transform_8, window_bounds = array<i64: 1, 128>}, {pipeline_mode = #tpu.pipeline_mode<synchronous>, transform_indices = @transform_9, window_bounds = array<i64: 2, 16, 128>}]} {
    %c0 = arith.constant 0 : index
    %c0_0 = arith.constant 0 : index
    %c0_1 = arith.constant 0 : index
    %0 = vector.load %arg1[%c0, %c0_0, %c0_1] : memref<2x16x128xf32, #tpu.memory_space<vmem>>, vector<2x16x128xf32>
    %1 = vector.shape_cast %0 : vector<2x16x128xf32> to vector<32x128xf32>
    %cst = arith.constant dense<0.000000e+00> : vector<32xf32>
    %2 = vector.multi_reduction <add>, %1, %cst [1] : vector<32x128xf32> to vector<32xf32>
    %3 = vector.shape_cast %2 : vector<32xf32> to vector<32x1xf32>
    %cst_2 = arith.constant 1.280000e+02 : f32
    %4 = vector.broadcast %cst_2 : f32 to vector<32x1xf32>
    %5 = arith.divf %3, %4 : vector<32x1xf32>
    %6 = vector.broadcast %5 : vector<32x1xf32> to vector<32x128xf32>
    %7 = arith.subf %1, %6 : vector<32x128xf32>
    %8 = arith.mulf %7, %7 : vector<32x128xf32>
    %cst_3 = arith.constant dense<0.000000e+00> : vector<32xf32>
    %9 = vector.multi_reduction <add>, %8, %cst_3 [1] : vector<32x128xf32> to vector<32xf32>
    %10 = vector.shape_cast %9 : vector<32xf32> to vector<32x1xf32>
    %cst_4 = arith.constant 1.280000e+02 : f32
    %11 = vector.broadcast %cst_4 : f32 to vector<32x1xf32>
    %12 = arith.divf %10, %11 : vector<32x1xf32>
    %13 = vector.broadcast %5 : vector<32x1xf32> to vector<32x128xf32>
    %14 = arith.subf %1, %13 : vector<32x128xf32>
    %cst_5 = arith.constant 9.99999974E-6 : f32
    %15 = vector.broadcast %cst_5 : f32 to vector<32x1xf32>
    %16 = arith.addf %12, %15 : vector<32x1xf32>
    %17 = math.rsqrt %16 : vector<32x1xf32>
    %18 = vector.broadcast %17 : vector<32x1xf32> to vector<32x128xf32>
    %19 = arith.mulf %14, %18 : vector<32x128xf32>
    %20 = arith.truncf %19 : vector<32x128xf32> to vector<32x128xbf16>
    %c0_6 = arith.constant 0 : index
    %c0_7 = arith.constant 0 : index
    %21 = vector.load %arg2[%c0_6, %c0_7] : memref<128x384xbf16, #tpu.memory_space<vmem>>, vector<128x384xbf16>
    %cst_8 = arith.constant dense<0.000000e+00> : vector<32x384xf32>
    %22 = tpu.matmul %20, %21, %cst_8 {dimension_numbers = #tpu.dot_dimension_numbers<[1], [0], [0], [1], [0, 0, 1, 1], [], []>} : vector<32x128xbf16>, vector<128x384xbf16>, vector<32x384xf32> -> vector<32x384xf32>
    %c0_9 = arith.constant 0 : index
    %c0_10 = arith.constant 0 : index
    %23 = vector.load %arg3[%c0_9, %c0_10] : memref<1x384xf32, #tpu.memory_space<vmem>>, vector<1x384xf32>
    %24 = vector.broadcast %23 : vector<1x384xf32> to vector<32x384xf32>
    %25 = arith.addf %22, %24 : vector<32x384xf32>
    %26 = vector.extract_strided_slice %25 {offsets = [0, 0], sizes = [32, 128], strides = [1, 1]} : vector<32x384xf32> to vector<32x128xf32>
    %27 = arith.truncf %26 : vector<32x128xf32> to vector<32x128xbf16>
    %28 = vector.extract_strided_slice %25 {offsets = [0, 128], sizes = [32, 128], strides = [1, 1]} : vector<32x384xf32> to vector<32x128xf32>
    %29 = arith.truncf %28 : vector<32x128xf32> to vector<32x128xbf16>
    %30 = vector.extract_strided_slice %25 {offsets = [0, 256], sizes = [32, 128], strides = [1, 1]} : vector<32x384xf32> to vector<32x128xf32>
    %31 = arith.truncf %30 : vector<32x128xf32> to vector<32x128xbf16>
    %32 = vector.extract_strided_slice %27 {offsets = [0, 0], sizes = [32, 32], strides = [1, 1]} : vector<32x128xbf16> to vector<32x32xbf16>
    %33 = vector.extract_strided_slice %32 {offsets = [0, 0], sizes = [16, 32], strides = [1, 1]} : vector<32x32xbf16> to vector<16x32xbf16>
    %34 = vector.extract_strided_slice %32 {offsets = [16, 0], sizes = [16, 32], strides = [1, 1]} : vector<32x32xbf16> to vector<16x32xbf16>
    %35 = vector.extract_strided_slice %27 {offsets = [0, 32], sizes = [32, 32], strides = [1, 1]} : vector<32x128xbf16> to vector<32x32xbf16>
    %36 = vector.extract_strided_slice %35 {offsets = [0, 0], sizes = [16, 32], strides = [1, 1]} : vector<32x32xbf16> to vector<16x32xbf16>
    %37 = vector.extract_strided_slice %35 {offsets = [16, 0], sizes = [16, 32], strides = [1, 1]} : vector<32x32xbf16> to vector<16x32xbf16>
    %38 = vector.extract_strided_slice %27 {offsets = [0, 64], sizes = [32, 32], strides = [1, 1]} : vector<32x128xbf16> to vector<32x32xbf16>
    %39 = vector.extract_strided_slice %38 {offsets = [0, 0], sizes = [16, 32], strides = [1, 1]} : vector<32x32xbf16> to vector<16x32xbf16>
    %40 = vector.extract_strided_slice %38 {offsets = [16, 0], sizes = [16, 32], strides = [1, 1]} : vector<32x32xbf16> to vector<16x32xbf16>
    %41 = vector.extract_strided_slice %27 {offsets = [0, 96], sizes = [32, 32], strides = [1, 1]} : vector<32x128xbf16> to vector<32x32xbf16>
    %42 = vector.extract_strided_slice %41 {offsets = [0, 0], sizes = [16, 32], strides = [1, 1]} : vector<32x32xbf16> to vector<16x32xbf16>
    %43 = vector.extract_strided_slice %41 {offsets = [16, 0], sizes = [16, 32], strides = [1, 1]} : vector<32x32xbf16> to vector<16x32xbf16>
    %44 = vector.shape_cast %33 : vector<16x32xbf16> to vector<1x16x32xbf16>
    %45 = vector.shape_cast %34 : vector<16x32xbf16> to vector<1x16x32xbf16>
    %46 = vector.shape_cast %36 : vector<16x32xbf16> to vector<1x16x32xbf16>
    %47 = vector.shape_cast %37 : vector<16x32xbf16> to vector<1x16x32xbf16>
    %48 = vector.shape_cast %39 : vector<16x32xbf16> to vector<1x16x32xbf16>
    %49 = vector.shape_cast %40 : vector<16x32xbf16> to vector<1x16x32xbf16>
    %50 = vector.shape_cast %42 : vector<16x32xbf16> to vector<1x16x32xbf16>
    %51 = vector.shape_cast %43 : vector<16x32xbf16> to vector<1x16x32xbf16>
    %52 = tpu.concatenate %44, %45, %46, %47, %48, %49, %50, %51 in 0 : vector<1x16x32xbf16>, vector<1x16x32xbf16>, vector<1x16x32xbf16>, vector<1x16x32xbf16>, vector<1x16x32xbf16>, vector<1x16x32xbf16>, vector<1x16x32xbf16>, vector<1x16x32xbf16> -> vector<8x16x32xbf16>
    %53 = vector.extract_strided_slice %29 {offsets = [0, 0], sizes = [32, 32], strides = [1, 1]} : vector<32x128xbf16> to vector<32x32xbf16>
    %54 = vector.extract_strided_slice %53 {offsets = [0, 0], sizes = [16, 32], strides = [1, 1]} : vector<32x32xbf16> to vector<16x32xbf16>
    %55 = vector.extract_strided_slice %53 {offsets = [16, 0], sizes = [16, 32], strides = [1, 1]} : vector<32x32xbf16> to vector<16x32xbf16>
    %56 = vector.extract_strided_slice %29 {offsets = [0, 32], sizes = [32, 32], strides = [1, 1]} : vector<32x128xbf16> to vector<32x32xbf16>
    %57 = vector.extract_strided_slice %56 {offsets = [0, 0], sizes = [16, 32], strides = [1, 1]} : vector<32x32xbf16> to vector<16x32xbf16>
    %58 = vector.extract_strided_slice %56 {offsets = [16, 0], sizes = [16, 32], strides = [1, 1]} : vector<32x32xbf16> to vector<16x32xbf16>
    %59 = vector.extract_strided_slice %29 {offsets = [0, 64], sizes = [32, 32], strides = [1, 1]} : vector<32x128xbf16> to vector<32x32xbf16>
    %60 = vector.extract_strided_slice %59 {offsets = [0, 0], sizes = [16, 32], strides = [1, 1]} : vector<32x32xbf16> to vector<16x32xbf16>
    %61 = vector.extract_strided_slice %59 {offsets = [16, 0], sizes = [16, 32], strides = [1, 1]} : vector<32x32xbf16> to vector<16x32xbf16>
    %62 = vector.extract_strided_slice %29 {offsets = [0, 96], sizes = [32, 32], strides = [1, 1]} : vector<32x128xbf16> to vector<32x32xbf16>
    %63 = vector.extract_strided_slice %62 {offsets = [0, 0], sizes = [16, 32], strides = [1, 1]} : vector<32x32xbf16> to vector<16x32xbf16>
    %64 = vector.extract_strided_slice %62 {offsets = [16, 0], sizes = [16, 32], strides = [1, 1]} : vector<32x32xbf16> to vector<16x32xbf16>
    %65 = vector.shape_cast %54 : vector<16x32xbf16> to vector<1x16x32xbf16>
    %66 = vector.shape_cast %55 : vector<16x32xbf16> to vector<1x16x32xbf16>
    %67 = vector.shape_cast %57 : vector<16x32xbf16> to vector<1x16x32xbf16>
    %68 = vector.shape_cast %58 : vector<16x32xbf16> to vector<1x16x32xbf16>
    %69 = vector.shape_cast %60 : vector<16x32xbf16> to vector<1x16x32xbf16>
    %70 = vector.shape_cast %61 : vector<16x32xbf16> to vector<1x16x32xbf16>
    %71 = vector.shape_cast %63 : vector<16x32xbf16> to vector<1x16x32xbf16>
    %72 = vector.shape_cast %64 : vector<16x32xbf16> to vector<1x16x32xbf16>
    %73 = tpu.concatenate %65, %66, %67, %68, %69, %70, %71, %72 in 0 : vector<1x16x32xbf16>, vector<1x16x32xbf16>, vector<1x16x32xbf16>, vector<1x16x32xbf16>, vector<1x16x32xbf16>, vector<1x16x32xbf16>, vector<1x16x32xbf16>, vector<1x16x32xbf16> -> vector<8x16x32xbf16>
    %74 = vector.extract_strided_slice %31 {offsets = [0, 0], sizes = [32, 32], strides = [1, 1]} : vector<32x128xbf16> to vector<32x32xbf16>
    %75 = vector.extract_strided_slice %74 {offsets = [0, 0], sizes = [16, 32], strides = [1, 1]} : vector<32x32xbf16> to vector<16x32xbf16>
    %76 = vector.extract_strided_slice %74 {offsets = [16, 0], sizes = [16, 32], strides = [1, 1]} : vector<32x32xbf16> to vector<16x32xbf16>
    %77 = vector.extract_strided_slice %31 {offsets = [0, 32], sizes = [32, 32], strides = [1, 1]} : vector<32x128xbf16> to vector<32x32xbf16>
    %78 = vector.extract_strided_slice %77 {offsets = [0, 0], sizes = [16, 32], strides = [1, 1]} : vector<32x32xbf16> to vector<16x32xbf16>
    %79 = vector.extract_strided_slice %77 {offsets = [16, 0], sizes = [16, 32], strides = [1, 1]} : vector<32x32xbf16> to vector<16x32xbf16>
    %80 = vector.extract_strided_slice %31 {offsets = [0, 64], sizes = [32, 32], strides = [1, 1]} : vector<32x128xbf16> to vector<32x32xbf16>
    %81 = vector.extract_strided_slice %80 {offsets = [0, 0], sizes = [16, 32], strides = [1, 1]} : vector<32x32xbf16> to vector<16x32xbf16>
    %82 = vector.extract_strided_slice %80 {offsets = [16, 0], sizes = [16, 32], strides = [1, 1]} : vector<32x32xbf16> to vector<16x32xbf16>
    %83 = vector.extract_strided_slice %31 {offsets = [0, 96], sizes = [32, 32], strides = [1, 1]} : vector<32x128xbf16> to vector<32x32xbf16>
    %84 = vector.extract_strided_slice %83 {offsets = [0, 0], sizes = [16, 32], strides = [1, 1]} : vector<32x32xbf16> to vector<16x32xbf16>
    %85 = vector.extract_strided_slice %83 {offsets = [16, 0], sizes = [16, 32], strides = [1, 1]} : vector<32x32xbf16> to vector<16x32xbf16>
    %86 = vector.shape_cast %75 : vector<16x32xbf16> to vector<1x16x32xbf16>
    %87 = vector.shape_cast %76 : vector<16x32xbf16> to vector<1x16x32xbf16>
    %88 = vector.shape_cast %78 : vector<16x32xbf16> to vector<1x16x32xbf16>
    %89 = vector.shape_cast %79 : vector<16x32xbf16> to vector<1x16x32xbf16>
    %90 = vector.shape_cast %81 : vector<16x32xbf16> to vector<1x16x32xbf16>
    %91 = vector.shape_cast %82 : vector<16x32xbf16> to vector<1x16x32xbf16>
    %92 = vector.shape_cast %84 : vector<16x32xbf16> to vector<1x16x32xbf16>
    %93 = vector.shape_cast %85 : vector<16x32xbf16> to vector<1x16x32xbf16>
    %94 = tpu.concatenate %86, %87, %88, %89, %90, %91, %92, %93 in 0 : vector<1x16x32xbf16>, vector<1x16x32xbf16>, vector<1x16x32xbf16>, vector<1x16x32xbf16>, vector<1x16x32xbf16>, vector<1x16x32xbf16>, vector<1x16x32xbf16>, vector<1x16x32xbf16> -> vector<8x16x32xbf16>
    "tpu.trace_start"() <{level = 10 : i32, message = "nqd,nkd->nqk"}> : () -> ()
    %cst_11 = arith.constant dense<0.000000e+00> : vector<8x16x16xf32>
    %95 = tpu.matmul %52, %73, %cst_11 {dimension_numbers = #tpu.dot_dimension_numbers<[2], [2], [1], [1], [0, 0, 0, 1, 1, 1], [0], [0]>} : vector<8x16x32xbf16>, vector<8x16x32xbf16>, vector<8x16x16xf32> -> vector<8x16x16xf32>
    "tpu.trace_stop"() : () -> ()
    %cst_12 = arith.constant dense<0xFF800000> : vector<8x16xf32>
    %96 = vector.multi_reduction <maximumf>, %95, %cst_12 [2] : vector<8x16x16xf32> to vector<8x16xf32>
    %97 = vector.shape_cast %96 : vector<8x16xf32> to vector<8x16x1xf32>
    %98 = vector.broadcast %97 : vector<8x16x1xf32> to vector<8x16x16xf32>
    %99 = arith.subf %95, %98 : vector<8x16x16xf32>
    %100 = math.exp %99 : vector<8x16x16xf32>
    %cst_13 = arith.constant dense<0.000000e+00> : vector<8x16xf32>
    %101 = vector.multi_reduction <add>, %100, %cst_13 [2] : vector<8x16x16xf32> to vector<8x16xf32>
    %102 = vector.shape_cast %101 : vector<8x16xf32> to vector<8x16x1xf32>
    %103 = tpu.reciprocal %102 {approx = true} : vector<8x16x1xf32> -> vector<8x16x1xf32>
    %104 = vector.broadcast %103 : vector<8x16x1xf32> to vector<8x16x16xf32>
    %105 = arith.mulf %100, %104 : vector<8x16x16xf32>
    %106 = arith.truncf %105 : vector<8x16x16xf32> to vector<8x16x16xbf16>
    "tpu.trace_start"() <{level = 10 : i32, message = "nqk,nkd->nqd"}> : () -> ()
    %cst_14 = arith.constant dense<0.000000e+00> : vector<8x16x32xf32>
    %107 = tpu.matmul %106, %94, %cst_14 {dimension_numbers = #tpu.dot_dimension_numbers<[2], [1], [1], [2], [0, 0, 0, 1, 1, 2], [0], [0]>} : vector<8x16x16xbf16>, vector<8x16x32xbf16>, vector<8x16x32xf32> -> vector<8x16x32xf32>
    "tpu.trace_stop"() : () -> ()
    %c0_15 = arith.constant 0 : index
    %c0_16 = arith.constant 0 : index
    %108 = vector.load %arg4[%c0_15, %c0_16] : memref<128x128xbf16, #tpu.memory_space<vmem>>, vector<128x128xbf16>
    %cst_17 = arith.constant 0.000000e+00 : f32
    %109 = vector.broadcast %cst_17 : f32 to vector<32x128xf32>
    %110 = vector.extract_strided_slice %107 {offsets = [0, 0, 0], sizes = [2, 16, 32], strides = [1, 1, 1]} : vector<8x16x32xf32> to vector<2x16x32xf32>
    %111 = vector.shape_cast %110 : vector<2x16x32xf32> to vector<32x32xf32>
    %112 = arith.truncf %111 : vector<32x32xf32> to vector<32x32xbf16>
    %113 = vector.extract_strided_slice %108 {offsets = [0, 0], sizes = [32, 128], strides = [1, 1]} : vector<128x128xbf16> to vector<32x128xbf16>
    %cst_18 = arith.constant dense<0.000000e+00> : vector<32x128xf32>
    %114 = tpu.matmul %112, %113, %cst_18 {dimension_numbers = #tpu.dot_dimension_numbers<[1], [0], [0], [1], [0, 0, 1, 1], [], []>} : vector<32x32xbf16>, vector<32x128xbf16>, vector<32x128xf32> -> vector<32x128xf32>
    %115 = arith.addf %109, %114 : vector<32x128xf32>
    %116 = vector.extract_strided_slice %107 {offsets = [2, 0, 0], sizes = [2, 16, 32], strides = [1, 1, 1]} : vector<8x16x32xf32> to vector<2x16x32xf32>
    %117 = vector.shape_cast %116 : vector<2x16x32xf32> to vector<32x32xf32>
    %118 = arith.truncf %117 : vector<32x32xf32> to vector<32x32xbf16>
    %119 = vector.extract_strided_slice %108 {offsets = [32, 0], sizes = [32, 128], strides = [1, 1]} : vector<128x128xbf16> to vector<32x128xbf16>
    %cst_19 = arith.constant dense<0.000000e+00> : vector<32x128xf32>
    %120 = tpu.matmul %118, %119, %cst_19 {dimension_numbers = #tpu.dot_dimension_numbers<[1], [0], [0], [1], [0, 0, 1, 1], [], []>} : vector<32x32xbf16>, vector<32x128xbf16>, vector<32x128xf32> -> vector<32x128xf32>
    %121 = arith.addf %115, %120 : vector<32x128xf32>
    %122 = vector.extract_strided_slice %107 {offsets = [4, 0, 0], sizes = [2, 16, 32], strides = [1, 1, 1]} : vector<8x16x32xf32> to vector<2x16x32xf32>
    %123 = vector.shape_cast %122 : vector<2x16x32xf32> to vector<32x32xf32>
    %124 = arith.truncf %123 : vector<32x32xf32> to vector<32x32xbf16>
    %125 = vector.extract_strided_slice %108 {offsets = [64, 0], sizes = [32, 128], strides = [1, 1]} : vector<128x128xbf16> to vector<32x128xbf16>
    %cst_20 = arith.constant dense<0.000000e+00> : vector<32x128xf32>
    %126 = tpu.matmul %124, %125, %cst_20 {dimension_numbers = #tpu.dot_dimension_numbers<[1], [0], [0], [1], [0, 0, 1, 1], [], []>} : vector<32x32xbf16>, vector<32x128xbf16>, vector<32x128xf32> -> vector<32x128xf32>
    %127 = arith.addf %121, %126 : vector<32x128xf32>
    %128 = vector.extract_strided_slice %107 {offsets = [6, 0, 0], sizes = [2, 16, 32], strides = [1, 1, 1]} : vector<8x16x32xf32> to vector<2x16x32xf32>
    %129 = vector.shape_cast %128 : vector<2x16x32xf32> to vector<32x32xf32>
    %130 = arith.truncf %129 : vector<32x32xf32> to vector<32x32xbf16>
    %131 = vector.extract_strided_slice %108 {offsets = [96, 0], sizes = [32, 128], strides = [1, 1]} : vector<128x128xbf16> to vector<32x128xbf16>
    %cst_21 = arith.constant dense<0.000000e+00> : vector<32x128xf32>
    %132 = tpu.matmul %130, %131, %cst_21 {dimension_numbers = #tpu.dot_dimension_numbers<[1], [0], [0], [1], [0, 0, 1, 1], [], []>} : vector<32x32xbf16>, vector<32x128xbf16>, vector<32x128xf32> -> vector<32x128xf32>
    %133 = arith.addf %127, %132 : vector<32x128xf32>
    %c0_22 = arith.constant 0 : index
    %c0_23 = arith.constant 0 : index
    %134 = vector.load %arg5[%c0_22, %c0_23] : memref<1x128xf32, #tpu.memory_space<vmem>>, vector<1x128xf32>
    %135 = vector.broadcast %134 : vector<1x128xf32> to vector<32x128xf32>
    %136 = arith.addf %133, %135 : vector<32x128xf32>
    %137 = arith.addf %1, %136 : vector<32x128xf32>
    %cst_24 = arith.constant dense<0.000000e+00> : vector<32xf32>
    %138 = vector.multi_reduction <add>, %137, %cst_24 [1] : vector<32x128xf32> to vector<32xf32>
    %139 = vector.shape_cast %138 : vector<32xf32> to vector<32x1xf32>
    %cst_25 = arith.constant 1.280000e+02 : f32
    %140 = vector.broadcast %cst_25 : f32 to vector<32x1xf32>
    %141 = arith.divf %139, %140 : vector<32x1xf32>
    %142 = vector.broadcast %141 : vector<32x1xf32> to vector<32x128xf32>
    %143 = arith.subf %137, %142 : vector<32x128xf32>
    %144 = arith.mulf %143, %143 : vector<32x128xf32>
    %cst_26 = arith.constant dense<0.000000e+00> : vector<32xf32>
    %145 = vector.multi_reduction <add>, %144, %cst_26 [1] : vector<32x128xf32> to vector<32xf32>
    %146 = vector.shape_cast %145 : vector<32xf32> to vector<32x1xf32>
    %cst_27 = arith.constant 1.280000e+02 : f32
    %147 = vector.broadcast %cst_27 : f32 to vector<32x1xf32>
    %148 = arith.divf %146, %147 : vector<32x1xf32>
    %149 = vector.broadcast %141 : vector<32x1xf32> to vector<32x128xf32>
    %150 = arith.subf %137, %149 : vector<32x128xf32>
    %cst_28 = arith.constant 9.99999974E-6 : f32
    %151 = vector.broadcast %cst_28 : f32 to vector<32x1xf32>
    %152 = arith.addf %148, %151 : vector<32x1xf32>
    %153 = math.rsqrt %152 : vector<32x1xf32>
    %154 = vector.broadcast %153 : vector<32x1xf32> to vector<32x128xf32>
    %155 = arith.mulf %150, %154 : vector<32x128xf32>
    %156 = arith.truncf %155 : vector<32x128xf32> to vector<32x128xbf16>
    %c0_29 = arith.constant 0 : index
    %c0_30 = arith.constant 0 : index
    %157 = vector.load %arg6[%c0_29, %c0_30] : memref<128x512xbf16, #tpu.memory_space<vmem>>, vector<128x512xbf16>
    %cst_31 = arith.constant dense<0.000000e+00> : vector<32x512xf32>
    %158 = tpu.matmul %156, %157, %cst_31 {dimension_numbers = #tpu.dot_dimension_numbers<[1], [0], [0], [1], [0, 0, 1, 1], [], []>} : vector<32x128xbf16>, vector<128x512xbf16>, vector<32x512xf32> -> vector<32x512xf32>
    %c0_32 = arith.constant 0 : index
    %c0_33 = arith.constant 0 : index
    %159 = vector.load %arg7[%c0_32, %c0_33] : memref<1x512xf32, #tpu.memory_space<vmem>>, vector<1x512xf32>
    %160 = vector.broadcast %159 : vector<1x512xf32> to vector<32x512xf32>
    %161 = arith.addf %158, %160 : vector<32x512xf32>
    %cst_34 = arith.constant 1.702000e+00 : f32
    %162 = vector.broadcast %cst_34 : f32 to vector<32x512xf32>
    %163 = arith.mulf %162, %161 : vector<32x512xf32>
    %164 = arith.negf %163 : vector<32x512xf32>
    %165 = math.exp %164 : vector<32x512xf32>
    %cst_35 = arith.constant 1.000000e+00 : f32
    %166 = vector.broadcast %cst_35 : f32 to vector<32x512xf32>
    %167 = arith.addf %166, %165 : vector<32x512xf32>
    %168 = arith.divf %166, %167 : vector<32x512xf32>
    %169 = arith.mulf %161, %168 : vector<32x512xf32>
    %170 = arith.truncf %169 : vector<32x512xf32> to vector<32x512xbf16>
    %c0_36 = arith.constant 0 : index
    %c0_37 = arith.constant 0 : index
    %171 = vector.load %arg8[%c0_36, %c0_37] : memref<512x128xbf16, #tpu.memory_space<vmem>>, vector<512x128xbf16>
    %cst_38 = arith.constant dense<0.000000e+00> : vector<32x128xf32>
    %172 = tpu.matmul %170, %171, %cst_38 {dimension_numbers = #tpu.dot_dimension_numbers<[1], [0], [0], [1], [0, 0, 1, 1], [], []>} : vector<32x512xbf16>, vector<512x128xbf16>, vector<32x128xf32> -> vector<32x128xf32>
    %c0_39 = arith.constant 0 : index
    %c0_40 = arith.constant 0 : index
    %173 = vector.load %arg9[%c0_39, %c0_40] : memref<1x128xf32, #tpu.memory_space<vmem>>, vector<1x128xf32>
    %174 = vector.broadcast %173 : vector<1x128xf32> to vector<32x128xf32>
    %175 = arith.addf %172, %174 : vector<32x128xf32>
    %176 = arith.addf %137, %175 : vector<32x128xf32>
    %177 = vector.shape_cast %176 : vector<32x128xf32> to vector<2x16x128xf32>
    %c0_41 = arith.constant 0 : index
    %c0_42 = arith.constant 0 : index
    %c0_43 = arith.constant 0 : index
    %178 = vector.load %arg10[%c0_41, %c0_42, %c0_43] : memref<2x16x128xf32, #tpu.memory_space<vmem>>, vector<2x16x128xf32>
    tpu.vector_store %arg10[%c0_41, %c0_42, %c0_43], %177 {strides = array<i32>} : memref<2x16x128xf32, #tpu.memory_space<vmem>>, vector<2x16x128xf32>,
    return
  }
  func.func @transform_0(%arg0: i32) -> (i32, i32, i32) {
    %c0_i32 = arith.constant 0 : i32
    %c0_i32_0 = arith.constant 0 : i32
    %c0_i32_1 = arith.constant 0 : i32
    %c0_i32_2 = arith.constant 0 : i32
    return %c0_i32, %c0_i32_0, %c0_i32_1 : i32, i32, i32
  }
  func.func @transform_1(%arg0: i32) -> (i32, i32) {
    %c0_i32 = arith.constant 0 : i32
    %c0_i32_0 = arith.constant 0 : i32
    %c0_i32_1 = arith.constant 0 : i32
    return %c0_i32, %c0_i32_0 : i32, i32
  }
  func.func @transform_2(%arg0: i32) -> (i32, i32) {
    %c0_i32 = arith.constant 0 : i32
    %c0_i32_0 = arith.constant 0 : i32
    %c0_i32_1 = arith.constant 0 : i32
    return %c0_i32, %c0_i32_0 : i32, i32
  }
  func.func @transform_3(%arg0: i32) -> (i32, i32) {
    %c0_i32 = arith.constant 0 : i32
    %c0_i32_0 = arith.constant 0 : i32
    %c0_i32_1 = arith.constant 0 : i32
    return %c0_i32, %c0_i32_0 : i32, i32
  }
  func.func @transform_4(%arg0: i32) -> (i32, i32) {
    %c0_i32 = arith.constant 0 : i32
    %c0_i32_0 = arith.constant 0 : i32
    %c0_i32_1 = arith.constant 0 : i32
    return %c0_i32, %c0_i32_0 : i32, i32
  }
  func.func @transform_5(%arg0: i32) -> (i32, i32) {
    %c0_i32 = arith.constant 0 : i32
    %c0_i32_0 = arith.constant 0 : i32
    %c0_i32_1 = arith.constant 0 : i32
    return %c0_i32, %c0_i32_0 : i32, i32
  }
  func.func @transform_6(%arg0: i32) -> (i32, i32) {
    %c0_i32 = arith.constant 0 : i32
    %c0_i32_0 = arith.constant 0 : i32
    %c0_i32_1 = arith.constant 0 : i32
    return %c0_i32, %c0_i32_0 : i32, i32
  }
  func.func @transform_7(%arg0: i32) -> (i32, i32) {
    %c0_i32 = arith.constant 0 : i32
    %c0_i32_0 = arith.constant 0 : i32
    %c0_i32_1 = arith.constant 0 : i32
    return %c0_i32, %c0_i32_0 : i32, i32
  }
  func.func @transform_8(%arg0: i32) -> (i32, i32) {
    %c0_i32 = arith.constant 0 : i32
    %c0_i32_0 = arith.constant 0 : i32
    %c0_i32_1 = arith.constant 0 : i32
    return %c0_i32, %c0_i32_0 : i32, i32
  }
  func.func @transform_9(%arg0: i32) -> (i32, i32, i32) {
    %c0_i32 = arith.constant 0 : i32
    %c0_i32_0 = arith.constant 0 : i32
    %c0_i32_1 = arith.constant 0 : i32
    %c0_i32_2 = arith.constant 0 : i32
    return %c0_i32, %c0_i32_0, %c0_i32_1 : i32, i32, i32
  }
}

</mosaic_0001>

<llo_original>
// kernel: residual_attention_block.1
$region0: #{residual_attention_block.1}
  #allocation0 [shape = 'u32[]', space=smem, size = 0x4, offset = 0x4, fixed_abs, tag = 'smem constant byte address 0x4 - core index']
  #allocation1 [shape = 'u32[144,128]{1,0:T(1,128)}', space=vmem, size = 0x12000, scoped, tag = 'internal scratch']
  %s0 = inlined_call_operand.hbm [shape: f32[2,16,128], index: 0, kind: input, shape index: {}]
  %s1 = inlined_call_operand.hbm [shape: bf16[128,384], index: 1, kind: input, shape index: {}]
  %s2 = inlined_call_operand.vmem [shape: f32[1,384], index: 2, kind: input, shape index: {}]
  %s3 = inlined_call_operand.hbm [shape: bf16[128,128], index: 3, kind: input, shape index: {}]
  %s4 = inlined_call_operand.vmem [shape: f32[1,128], index: 4, kind: input, shape index: {}]
  %s5 = inlined_call_operand.hbm [shape: bf16[128,512], index: 5, kind: input, shape index: {}]
  %s6 = inlined_call_operand.hbm [shape: f32[1,512], index: 6, kind: input, shape index: {}]
  %s7 = inlined_call_operand.hbm [shape: bf16[512,128], index: 7, kind: input, shape index: {}]
  %s8 = inlined_call_operand.vmem [shape: f32[1,128], index: 8, kind: input, shape index: {}]
  %s9 = inlined_call_operand.hbm [shape: f32[2,16,128], index: 9, kind: output, shape index: {}]
  %s10 = sld [smem:[#allocation0]]
  $region70: #{residual_attention_block.1} parent=0
    _
  %s12 = ssub.s32 1, %s10
  %s13 = scalar_select 0, %s12, %s10
  $region1: #{residual_attention_block.1} parent=0
    #allocation2 [shape = 'u8[16384]{0}', space=vmem, size = 0x4000, scoped, tag = 'input window, operand 0, single buffered']
    #allocation3 [shape = 's32[1]{0}', space=sflag, size = 0x4, scoped, tag = 'scoped memory for residual_attention_block.1']
    #allocation4 [shape = 's32[1]{0}', space=sflag, size = 0x4, scoped, tag = 'scoped memory for residual_attention_block.1']
    #allocation5 [shape = 'u8[98304]{0}', space=vmem, size = 0x18000, scoped, tag = 'input window, operand 1, single buffered']
    #allocation6 [shape = 's32[1]{0}', space=sflag, size = 0x4, scoped, tag = 'scoped memory for residual_attention_block.1']
    #allocation7 [shape = 'u8[32768]{0}', space=vmem, size = 0x8000, scoped, tag = 'input window, operand 3, single buffered']
    #allocation8 [shape = 'u8[131072]{0}', space=vmem, size = 0x20000, scoped, tag = 'input window, operand 5, single buffered']
    #allocation9 [shape = 's32[1]{0}', space=sflag, size = 0x4, scoped, tag = 'scoped memory for residual_attention_block.1']
    #allocation10 [shape = 'u8[2048]{0}', space=vmem, size = 0x800, scoped, tag = 'input window, operand 6, single buffered']
    #allocation11 [shape = 'u8[131072]{0}', space=vmem, size = 0x20000, scoped, tag = 'input window, operand 7, single buffered']
    #allocation12 [shape = 's32[1]{0}', space=sflag, size = 0x4, scoped, tag = 'scoped memory for residual_attention_block.1']
    #allocation13 [shape = 'u8[16384]{0}', space=vmem, size = 0x4000, scoped, tag = 'output window, operand 0, single buffered']
    %14 = vsyncpa [#allocation3], 0
    %15 = vsyncpa [#allocation6], 0
    %16 = vsyncpa [#allocation9], 0
    %17 = vsyncpa [#allocation12], 0
    %18 = vsyncpa [#allocation4], 0
    // Predicated region
    $region2: #{residual_attention_block.1} parent=1 // pred_check
      _
    $region3: #{residual_attention_block.1} parent=1 // pred_check_branch
      %20 = sbr.rel (0) target = $region5
    $region4: #{residual_attention_block.1} parent=1 // pred_region
      %s22 = ssub.s32 512, 512
      %23 = vsyncadd [#allocation3], %s22
      %s24 = sshll.u32 [#allocation2], 4
      %s25 = int_to_ptr.vmem [resolvable:$true] %s24
      %30 = dma.hbm_to_vmem [thread:$0]  %s0, 512, %s25, [#allocation3], 128, 128, 8
    $region5: #{residual_attention_block.1} parent=1 // pred_fallthru
      _
    // Predicated region
    $region6: #{residual_attention_block.1} parent=1 // pred_check
      _
    $region7: #{residual_attention_block.1} parent=1 // pred_check_branch
      %32 = sbr.rel (0) target = $region9
    $region8: #{residual_attention_block.1} parent=1 // pred_region
      %s34 = ssub.s32 3072, 3072
      %35 = vsyncadd [#allocation6], %s34
      %s36 = sshll.u32 [#allocation5], 4
      %s37 = int_to_ptr.vmem [resolvable:$true] %s36
      %42 = dma.hbm_to_vmem [thread:$0]  %s1, 3072, %s37, [#allocation6], 192, 192, 12
    $region9: #{residual_attention_block.1} parent=1 // pred_fallthru
      _
    // Predicated region
    $region10: #{residual_attention_block.1} parent=1 // pred_check
      _
    $region11: #{residual_attention_block.1} parent=1 // pred_check_branch
      %44 = sbr.rel (0) target = $region13
    $region12: #{residual_attention_block.1} parent=1 // pred_region
      _
    $region13: #{residual_attention_block.1} parent=1 // pred_fallthru
      _
    // Predicated region
    $region14: #{residual_attention_block.1} parent=1 // pred_check
      _
    $region15: #{residual_attention_block.1} parent=1 // pred_check_branch
      %46 = sbr.rel (0) target = $region17
    $region16: #{residual_attention_block.1} parent=1 // pred_region
      %s48 = ssub.s32 1024, 1024
      %49 = vsyncadd [#allocation6], %s48
      %s50 = sshll.u32 [#allocation7], 4
      %s51 = int_to_ptr.vmem [resolvable:$true] %s50
      %56 = dma.hbm_to_vmem [thread:$0]  %s3, 1024, %s51, [#allocation6], 64, 64, 4
    $region17: #{residual_attention_block.1} parent=1 // pred_fallthru
      _
    // Predicated region
    $region18: #{residual_attention_block.1} parent=1 // pred_check
      _
    $region19: #{residual_attention_block.1} parent=1 // pred_check_branch
      %58 = sbr.rel (0) target = $region21
    $region20: #{residual_attention_block.1} parent=1 // pred_region
      _
    $region21: #{residual_attention_block.1} parent=1 // pred_fallthru
      _
    // Predicated region
    $region22: #{residual_attention_block.1} parent=1 // pred_check
      _
    $region23: #{residual_attention_block.1} parent=1 // pred_check_branch
      %60 = sbr.rel (0) target = $region25
    $region24: #{residual_attention_block.1} parent=1 // pred_region
      %s62 = ssub.s32 4096, 4096
      %63 = vsyncadd [#allocation9], %s62
      %s64 = sshll.u32 [#allocation8], 4
      %s65 = int_to_ptr.vmem [resolvable:$true] %s64
      %70 = dma.hbm_to_vmem [thread:$0]  %s5, 4096, %s65, [#allocation9], 256, 256, 16
    $region25: #{residual_attention_block.1} parent=1 // pred_fallthru
      _
    // Predicated region
    $region26: #{residual_attention_block.1} parent=1 // pred_check
      _
    $region27: #{residual_attention_block.1} parent=1 // pred_check_branch
      %72 = sbr.rel (0) target = $region29
    $region28: #{residual_attention_block.1} parent=1 // pred_region
      %s74 = ssub.s32 64, 64
      %75 = vsyncadd [#allocation9], %s74
      %s77 = sshll.u32 [#allocation10], 4
      %s78 = int_to_ptr.vmem [resolvable:$true] %s77
      %80 = dma.hbm_to_vmem [thread:$0]  %s6, 64, %s78, [#allocation9]
    $region29: #{residual_attention_block.1} parent=1 // pred_fallthru
      _
    // Predicated region
    $region30: #{residual_attention_block.1} parent=1 // pred_check
      _
    $region31: #{residual_attention_block.1} parent=1 // pred_check_branch
      %82 = sbr.rel (0) target = $region33
    $region32: #{residual_attention_block.1} parent=1 // pred_region
      %s84 = ssub.s32 4096, 4096
      %85 = vsyncadd [#allocation12], %s84
      %s86 = sshll.u32 [#allocation11], 4
      %s87 = int_to_ptr.vmem [resolvable:$true] %s86
      %92 = dma.hbm_to_vmem [thread:$0]  %s7, 4096, %s87, [#allocation12], 64, 64, 4
    $region33: #{residual_attention_block.1} parent=1 // pred_fallthru
      _
    // Predicated region
    $region34: #{residual_attention_block.1} parent=1 // pred_check
      _
    $region35: #{residual_attention_block.1} parent=1 // pred_check_branch
      %94 = sbr.rel (0) target = $region37
    $region36: #{residual_attention_block.1} parent=1 // pred_region
      _
    $region37: #{residual_attention_block.1} parent=1 // pred_fallthru
      _
    // Predicated region
    $region38: #{residual_attention_block.1} parent=1 // pred_check
      _
    $region39: #{residual_attention_block.1} parent=1 // pred_check_branch
      %96 = sbr.rel (0) target = $region41
    $region40: #{residual_attention_block.1} parent=1 // pred_region
      %97 = dma.done [#allocation3], 512
    $region41: #{residual_attention_block.1} parent=1 // pred_fallthru
      _
    // Predicated region
    $region42: #{residual_attention_block.1} parent=1 // pred_check
      _
    $region43: #{residual_attention_block.1} parent=1 // pred_check_branch
      %99 = sbr.rel (0) target = $region45
    $region44: #{residual_attention_block.1} parent=1 // pred_region
      %100 = dma.done [#allocation6], 3072
    $region45: #{residual_attention_block.1} parent=1 // pred_fallthru
      _
    // Predicated region
    $region46: #{residual_attention_block.1} parent=1 // pred_check
      _
    $region47: #{residual_attention_block.1} parent=1 // pred_check_branch
      %102 = sbr.rel (0) target = $region49
    $region48: #{residual_attention_block.1} parent=1 // pred_region
      %103 = dma.done [#allocation6], 1024
    $region49: #{residual_attention_block.1} parent=1 // pred_fallthru
      _
    // Predicated region
    $region50: #{residual_attention_block.1} parent=1 // pred_check
      _
    $region51: #{residual_attention_block.1} parent=1 // pred_check_branch
      %105 = sbr.rel (0) target = $region53
    $region52: #{residual_attention_block.1} parent=1 // pred_region
      %106 = dma.done [#allocation9], 4096
    $region53: #{residual_attention_block.1} parent=1 // pred_fallthru
      _
    // Predicated region
    $region54: #{residual_attention_block.1} parent=1 // pred_check
      _
    $region55: #{residual_attention_block.1} parent=1 // pred_check_branch
      %108 = sbr.rel (0) target = $region57
    $region56: #{residual_attention_block.1} parent=1 // pred_region
      %109 = dma.done [#allocation9], 64
    $region57: #{residual_attention_block.1} parent=1 // pred_fallthru
      _
    // Predicated region
    $region58: #{residual_attention_block.1} parent=1 // pred_check
      _
    $region59: #{residual_attention_block.1} parent=1 // pred_check_branch
      %111 = sbr.rel (0) target = $region61
    $region60: #{residual_attention_block.1} parent=1 // pred_region
      %112 = dma.done [#allocation12], 4096
    $region61: #{residual_attention_block.1} parent=1 // pred_fallthru
      _
    %v114 = vld [vmem:[#allocation2] sm:$0xff]
    %v115 = vld [vmem:[#allocation2 + $0x8] sm:$0xff]
    %v116 = vld [vmem:[#allocation2 + $0x10] sm:$0xff]
    %v117 = vld [vmem:[#allocation2 + $0x18] sm:$0xff]
    %118 = vadd.xlane.f32.xlu0 %v114
    %v119 = vpop.xlane.xlu0 %118
    %120 = vadd.xlane.f32.xlu0 %v115
    %v121 = vpop.xlane.xlu0 %120
    %122 = vadd.xlane.f32.xlu0 %v116
    %v123 = vpop.xlane.xlu0 %122
    %124 = vadd.xlane.f32.xlu0 %v117
    %v125 = vpop.xlane.xlu0 %124
    %v126 = vrcp.pop 128.0
    %v127 = vmul.f32 %v119, %v126
    %v128 = vmul.f32 %v121, %v126
    %v129 = vmul.f32 %v123, %v126
    %v130 = vmul.f32 %v125, %v126
    %v131 = vsub.f32 %v114, %v127
    %v132 = vsub.f32 %v115, %v128
    %v133 = vsub.f32 %v116, %v129
    %v134 = vsub.f32 %v117, %v130
    %v135 = vmul.f32 %v131, %v131
    %v136 = vmul.f32 %v132, %v132
    %v137 = vmul.f32 %v133, %v133
    %v138 = vmul.f32 %v134, %v134
    %139 = vadd.xlane.f32.xlu0 %v135
    %v140 = vpop.xlane.xlu0 %139
    %141 = vadd.xlane.f32.xlu0 %v136
    %v142 = vpop.xlane.xlu0 %141
    %143 = vadd.xlane.f32.xlu0 %v137
    %v144 = vpop.xlane.xlu0 %143
    %145 = vadd.xlane.f32.xlu0 %v138
    %v146 = vpop.xlane.xlu0 %145
    %v147 = vmul.f32 %v140, %v126
    %v148 = vmul.f32 %v142, %v126
    %v149 = vmul.f32 %v144, %v126
    %v150 = vmul.f32 %v146, %v126
    %v151 = vadd.f32 %v147, 1e-05
    %v152 = vadd.f32 %v148, 1e-05
    %v153 = vadd.f32 %v149, 1e-05
    %v154 = vadd.f32 %v150, 1e-05
    %v155 = vrsqrt.pop %v151
    %v156 = vrsqrt.pop %v152
    %v157 = vrsqrt.pop %v153
    %v158 = vrsqrt.pop %v154
    %v159 = vmul.f32 %v131, %v155
    %v160 = vmul.f32 %v132, %v156
    %v161 = vmul.f32 %v133, %v157
    %v162 = vmul.f32 %v134, %v158
    %v163 = vpack.c.bf16 %v160, %v159
    %v164 = vpack.c.bf16 %v162, %v161
    %v165 = vld [vmem:[#allocation5] sm:$0xff]
    %v166 = vld [vmem:[#allocation5 + $0x8] sm:$0xf]
    %v167 = vld [vmem:[#allocation5 + $0xc] sm:$0xff]
    %v168 = vld [vmem:[#allocation5 + $0x14] sm:$0xf]
    %v169 = vld [vmem:[#allocation5 + $0x18] sm:$0xff]
    %v170 = vld [vmem:[#allocation5 + $0x20] sm:$0xf]
    %v171 = vld [vmem:[#allocation5 + $0x24] sm:$0xff]
    %v172 = vld [vmem:[#allocation5 + $0x2c] sm:$0xf]
    %v173 = vld [vmem:[#allocation5 + $0x30] sm:$0xff]
    %v174 = vld [vmem:[#allocation5 + $0x38] sm:$0xf]
    %v175 = vld [vmem:[#allocation5 + $0x3c] sm:$0xff]
    %v176 = vld [vmem:[#allocation5 + $0x44] sm:$0xf]
    %v177 = vld [vmem:[#allocation5 + $0x48] sm:$0xff]
    %v178 = vld [vmem:[#allocation5 + $0x50] sm:$0xf]
    %v179 = vld [vmem:[#allocation5 + $0x54] sm:$0xff]
    %v180 = vld [vmem:[#allocation5 + $0x5c] sm:$0xf]
    %v181 = vld [vmem:[#allocation5 + $0x60] sm:$0xff]
    %v182 = vld [vmem:[#allocation5 + $0x68] sm:$0xf]
    %v183 = vld [vmem:[#allocation5 + $0x6c] sm:$0xff]
    %v184 = vld [vmem:[#allocation5 + $0x74] sm:$0xf]
    %v185 = vld [vmem:[#allocation5 + $0x78] sm:$0xff]
    %v186 = vld [vmem:[#allocation5 + $0x80] sm:$0xf]
    %v187 = vld [vmem:[#allocation5 + $0x84] sm:$0xff]
    %v188 = vld [vmem:[#allocation5 + $0x8c] sm:$0xf]
    %v189 = vld [vmem:[#allocation5 + $0x90] sm:$0xff]
    %v190 = vld [vmem:[#allocation5 + $0x98] sm:$0xf]
    %v191 = vld [vmem:[#allocation5 + $0x9c] sm:$0xff]
    %v192 = vld [vmem:[#allocation5 + $0xa4] sm:$0xf]
    %v193 = vld [vmem:[#allocation5 + $0xa8] sm:$0xff]
    %v194 = vld [vmem:[#allocation5 + $0xb0] sm:$0xf]
    %v195 = vld [vmem:[#allocation5 + $0xb4] sm:$0xff]
    %v196 = vld [vmem:[#allocation5 + $0xbc] sm:$0xf]
    %v197 = vld [vmem:[%s2] sm:$0x7]
    %v199 = vlaneseq
    %v200 = vshrl.u32 %v199, 7
    %v201 = vsub.s32 0, %v200
    %v202 = vrot.slane %v197, %v201
    %v203 = vlaneseq
    %v204 = vshrl.u32 %v203, 7
    %v205 = vsub.s32 1, %v204
    %v206 = vrot.slane %v197, %v205
    %v207 = vlaneseq
    %v208 = vshrl.u32 %v207, 7
    %v209 = vsub.s32 2, %v208
    %v210 = vrot.slane %v197, %v209
    %v246 = vunpack.c.l.b16 %v165
    %v247 = vunpack.c.h.b16 %v165
    %v248 = vunpack.c.l.b16 %v166
    %v249 = vunpack.c.l.b16 %v167
    %v250 = vunpack.c.h.b16 %v167
    %v251 = vunpack.c.l.b16 %v168
    %v252 = vunpack.c.l.b16 %v169
    %v253 = vunpack.c.h.b16 %v169
    %v254 = vunpack.c.l.b16 %v170
    %v255 = vunpack.c.l.b16 %v171
    %v256 = vunpack.c.h.b16 %v171
    %v257 = vunpack.c.l.b16 %v172
    %v258 = vunpack.c.l.b16 %v173
    %v259 = vunpack.c.h.b16 %v173
    %v260 = vunpack.c.l.b16 %v174
    %v261 = vunpack.c.l.b16 %v175
    %v262 = vunpack.c.h.b16 %v175
    %v263 = vunpack.c.l.b16 %v176
    %v264 = vunpack.c.l.b16 %v177
    %v265 = vunpack.c.h.b16 %v177
    %v266 = vunpack.c.l.b16 %v178
    %v267 = vunpack.c.l.b16 %v179
    %v268 = vunpack.c.h.b16 %v179
    %v269 = vunpack.c.l.b16 %v180
    %v270 = vunpack.c.l.b16 %v181
    %v271 = vunpack.c.h.b16 %v181
    %v272 = vunpack.c.l.b16 %v182
    %v273 = vunpack.c.l.b16 %v183
    %v274 = vunpack.c.h.b16 %v183
    %v275 = vunpack.c.l.b16 %v184
    %v276 = vunpack.c.l.b16 %v185
    %v277 = vunpack.c.h.b16 %v185
    %v278 = vunpack.c.l.b16 %v186
    %v279 = vunpack.c.l.b16 %v187
    %v280 = vunpack.c.h.b16 %v187
    %v281 = vunpack.c.l.b16 %v188
    %v282 = vunpack.c.l.b16 %v189
    %v283 = vunpack.c.h.b16 %v189
    %v284 = vunpack.c.l.b16 %v190
    %v285 = vunpack.c.l.b16 %v191
    %v286 = vunpack.c.h.b16 %v191
    %v287 = vunpack.c.l.b16 %v192
    %v288 = vunpack.c.l.b16 %v193
    %v289 = vunpack.c.h.b16 %v193
    %v290 = vunpack.c.l.b16 %v194
    %v291 = vunpack.c.l.b16 %v195
    %v292 = vunpack.c.h.b16 %v195
    %v293 = vunpack.c.l.b16 %v196
    %v294 = vpack.c.b16 %v249, %v246
    %v295 = vpack.c.b16 %v250, %v247
    %v296 = vpack.c.b16 %v251, %v248
    %v297 = vpack.c.b16 %v255, %v252
    %v298 = vpack.c.b16 %v256, %v253
    %v299 = vpack.c.b16 %v257, %v254
    %v300 = vpack.c.b16 %v261, %v258
    %v301 = vpack.c.b16 %v262, %v259
    %v302 = vpack.c.b16 %v263, %v260
    %v303 = vpack.c.b16 %v267, %v264
    %v304 = vpack.c.b16 %v268, %v265
    %v305 = vpack.c.b16 %v269, %v266
    %v306 = vpack.c.b16 %v273, %v270
    %v307 = vpack.c.b16 %v274, %v271
    %v308 = vpack.c.b16 %v275, %v272
    %v309 = vpack.c.b16 %v279, %v276
    %v310 = vpack.c.b16 %v280, %v277
    %v311 = vpack.c.b16 %v281, %v278
    %v312 = vpack.c.b16 %v285, %v282
    %v313 = vpack.c.b16 %v286, %v283
    %v314 = vpack.c.b16 %v287, %v284
    %v315 = vpack.c.b16 %v291, %v288
    %v316 = vpack.c.b16 %v292, %v289
    %v317 = vpack.c.b16 %v293, %v290
    %342 = vmatprep.subr.bf16.mxu0 %v316
    %343 = vmatpush1.bf16.msra.mxu0 %v315
    %344 = vmatprep.subr.bf16.mxu0 %v313
    %345 = vmatpush1.bf16.msra.mxu0 %v312
    %346 = vmatprep.subr.bf16.mxu0 %v310
    %347 = vmatpush1.bf16.msra.mxu0 %v309
    %348 = vmatprep.subr.bf16.mxu0 %v307
    %349 = vmatpush1.bf16.msra.mxu0 %v306
    %350 = vmatprep.subr.bf16.mxu0 %v304
    %351 = vmatpush1.bf16.msra.mxu0 %v303
    %352 = vmatprep.subr.bf16.mxu0 %v301
    %353 = vmatpush1.bf16.msra.mxu0 %v300
    %354 = vmatprep.subr.bf16.mxu0 %v298
    %355 = vmatpush1.bf16.msra.mxu0 %v297
    %356 = vmatprep.subr.bf16.mxu0 %v295
    %357 = vmatpush1.bf16.msra.mxu0 %v294
    %358 = vmatprep.subr.bf16.mxu0 0
    %359 = vmatpush2.bf16.msra.mxu0 0
    %360 = vmatprep.subr.bf16.mxu0 0
    %361 = vmatpush2.bf16.msra.mxu0 0
    %362 = vmatprep.subr.bf16.mxu0 0
    %363 = vmatpush2.bf16.msra.mxu0 0
    %364 = vmatprep.subr.bf16.mxu0 0
    %365 = vmatpush2.bf16.msra.mxu0 0
    %366 = vmatprep.subr.bf16.mxu0 0
    %367 = vmatpush2.bf16.msra.mxu0 0
    %368 = vmatprep.subr.bf16.mxu0 0
    %369 = vmatpush2.bf16.msra.mxu0 0
    %370 = vmatprep.subr.bf16.mxu0 0
    %371 = vmatpush2.bf16.msra.mxu0 0
    %372 = vmatprep.subr.bf16.mxu0 0
    %373 = vmatpush2.bf16.msra.mxu0 0
    %374 = vmatprep.mubr.bf16.mxu0 0
    %375 = vmatmul.mubr.bf16.gmra.mxu0 %v163
    %v376 = vpop.f32.mrf.mxu0
    %v377 = vadd.f32 %v202, %v376
    %v378 = vpop.f32.mrf.mxu0
    %v379 = vadd.f32 %v206, %v378
    %v380 = vpop.f32.mrf.mxu0
    %v381 = vadd.f32 %v202, %v380
    %v382 = vpop.f32.mrf.mxu0
    %v383 = vadd.f32 %v206, %v382
    %384 = vmatprep.mubr.bf16.mxu0 0
    %385 = vmatmul.mubr.bf16.gmra.mxu0 %v164
    %v386 = vpop.f32.mrf.mxu0
    %v387 = vadd.f32 %v202, %v386
    %v388 = vpop.f32.mrf.mxu0
    %v389 = vadd.f32 %v206, %v388
    %v390 = vpop.f32.mrf.mxu0
    %v391 = vadd.f32 %v202, %v390
    %v392 = vpop.f32.mrf.mxu0
    %v393 = vadd.f32 %v206, %v392
    %394 = vdwg.mxu0
    %395 = vmatprep.subr.bf16.mxu0 0
    %396 = vmatpush1.bf16.msra.mxu0 %v317
    %397 = vmatprep.subr.bf16.mxu0 0
    %398 = vmatpush1.bf16.msra.mxu0 %v314
    %399 = vmatprep.subr.bf16.mxu0 0
    %400 = vmatpush1.bf16.msra.mxu0 %v311
    %401 = vmatprep.subr.bf16.mxu0 0
    %402 = vmatpush1.bf16.msra.mxu0 %v308
    %403 = vmatprep.subr.bf16.mxu0 0
    %404 = vmatpush1.bf16.msra.mxu0 %v305
    %405 = vmatprep.subr.bf16.mxu0 0
    %406 = vmatpush1.bf16.msra.mxu0 %v302
    %407 = vmatprep.subr.bf16.mxu0 0
    %408 = vmatpush1.bf16.msra.mxu0 %v299
    %409 = vmatprep.subr.bf16.mxu0 0
    %410 = vmatpush1.bf16.msra.mxu0 %v296
    %411 = vmatprep.subr.bf16.mxu0 0
    %412 = vmatpush2.bf16.msra.mxu0 0
    %413 = vmatprep.subr.bf16.mxu0 0
    %414 = vmatpush2.bf16.msra.mxu0 0
    %415 = vmatprep.subr.bf16.mxu0 0
    %416 = vmatpush2.bf16.msra.mxu0 0
    %417 = vmatprep.subr.bf16.mxu0 0
    %418 = vmatpush2.bf16.msra.mxu0 0
    %419 = vmatprep.subr.bf16.mxu0 0
    %420 = vmatpush2.bf16.msra.mxu0 0
    %421 = vmatprep.subr.bf16.mxu0 0
    %422 = vmatpush2.bf16.msra.mxu0 0
    %423 = vmatprep.subr.bf16.mxu0 0
    %424 = vmatpush2.bf16.msra.mxu0 0
    %425 = vmatprep.subr.bf16.mxu0 0
    %426 = vmatpush2.bf16.msra.mxu0 0
    %427 = vmatprep.mubr.bf16.mxu0 0
    %428 = vmatmul.mubr.bf16.gmra.mxu0 %v163
    %v429 = vpop.f32.mrf.mxu0
    %v430 = vadd.f32 %v210, %v429
    %v431 = vpop.f32.mrf.mxu0
    %v432 = vpop.f32.mrf.mxu0
    %v433 = vadd.f32 %v210, %v432
    %v434 = vpop.f32.mrf.mxu0
    %435 = vmatprep.mubr.bf16.mxu0 0
    %436 = vmatmul.mubr.bf16.gmra.mxu0 %v164
    %v437 = vpop.f32.mrf.mxu0
    %v438 = vadd.f32 %v210, %v437
    %v439 = vpop.f32.mrf.mxu0
    %v440 = vpop.f32.mrf.mxu0
    %v441 = vadd.f32 %v210, %v440
    %v442 = vpop.f32.mrf.mxu0
    %443 = vdwg.mxu0
    %v444 = vpack.c.bf16 %v381, %v377
    %v445 = vpack.c.bf16 %v391, %v387
    %v446 = vpack.c.bf16 %v383, %v379
    %v447 = vpack.c.bf16 %v393, %v389
    %v448 = vpack.c.bf16 %v433, %v430
    %v449 = vpack.c.bf16 %v441, %v438
    %451 = vrot.lane.b32.xlu0 %v444, 96
    %v452 = vpop.permute.xlu0 %451
    %454 = vrot.lane.b32.xlu0 %v445, 96
    %v455 = vpop.permute.xlu0 %454
    %456 = vrot.lane.b32.xlu0 %v444, 64
    %v457 = vpop.permute.xlu0 %456
    %458 = vrot.lane.b32.xlu0 %v445, 64
    %v459 = vpop.permute.xlu0 %458
    %460 = vrot.lane.b32.xlu0 %v444, 32
    %v461 = vpop.permute.xlu0 %460
    %462 = vrot.lane.b32.xlu0 %v445, 32
    %v463 = vpop.permute.xlu0 %462
    %465 = vrot.lane.b32.xlu0 %v446, 96
    %v466 = vpop.permute.xlu0 %465
    %468 = vrot.lane.b32.xlu0 %v447, 96
    %v469 = vpop.permute.xlu0 %468
    %470 = vrot.lane.b32.xlu0 %v446, 64
    %v471 = vpop.permute.xlu0 %470
    %472 = vrot.lane.b32.xlu0 %v447, 64
    %v473 = vpop.permute.xlu0 %472
    %474 = vrot.lane.b32.xlu0 %v446, 32
    %v475 = vpop.permute.xlu0 %474
    %476 = vrot.lane.b32.xlu0 %v447, 32
    %v477 = vpop.permute.xlu0 %476
    %479 = vrot.lane.b32.xlu0 %v448, 96
    %v480 = vpop.permute.xlu0 %479
    %483 = vrot.lane.b32.xlu0 %v449, 96
    %v484 = vpop.permute.xlu0 %483
    %486 = vrot.lane.b32.xlu0 %v448, 64
    %v487 = vpop.permute.xlu0 %486
    %489 = vrot.lane.b32.xlu0 %v449, 64
    %v490 = vpop.permute.xlu0 %489
    %492 = vrot.lane.b32.xlu0 %v448, 32
    %v493 = vpop.permute.xlu0 %492
    %495 = vrot.lane.b32.xlu0 %v449, 32
    %v496 = vpop.permute.xlu0 %495
    %vm498 = vcmask 261120
    %v500 = vsel %vm498, %v444, 0
    %v503 = vsel %vm498, %v446, 0
    %505 = vmatprep.subr.bf16.mxu0 0
    %506 = vmatpush1.bf16.xpose.msra.mxu0 0
    %507 = vmatprep.subr.bf16.mxu0 0
    %508 = vmatpush1.bf16.xpose.msra.mxu0 0
    %509 = vmatprep.subr.bf16.mxu0 0
    %510 = vmatpush1.bf16.xpose.msra.mxu0 0
    %511 = vmatprep.subr.bf16.mxu0 0
    %512 = vmatpush1.bf16.xpose.msra.mxu0 0
    %513 = vmatprep.subr.bf16.mxu0 0
    %514 = vmatpush1.bf16.xpose.msra.mxu0 0
    %515 = vmatprep.subr.bf16.mxu0 0
    %516 = vmatpush1.bf16.xpose.msra.mxu0 0
    %517 = vmatprep.subr.bf16.mxu0 0
    %518 = vmatpush1.bf16.xpose.msra.mxu0 0
    %519 = vmatprep.subr.bf16.mxu0 0
    %520 = vmatpush1.bf16.xpose.msra.mxu0 %v503
    %521 = vmatprep.subr.bf16.mxu0 0
    %522 = vmatpush2.bf16.xpose.msra.mxu0 0
    %523 = vmatprep.subr.bf16.mxu0 0
    %524 = vmatpush2.bf16.xpose.msra.mxu0 0
    %525 = vmatprep.subr.bf16.mxu0 0
    %526 = vmatpush2.bf16.xpose.msra.mxu0 0
    %527 = vmatprep.subr.bf16.mxu0 0
    %528 = vmatpush2.bf16.xpose.msra.mxu0 0
    %529 = vmatprep.subr.bf16.mxu0 0
    %530 = vmatpush2.bf16.xpose.msra.mxu0 0
    %531 = vmatprep.subr.bf16.mxu0 0
    %532 = vmatpush2.bf16.xpose.msra.mxu0 0
    %533 = vmatprep.subr.bf16.mxu0 0
    %534 = vmatpush2.bf16.xpose.msra.mxu0 0
    %535 = vmatprep.subr.bf16.mxu0 0
    %536 = vmatpush2.bf16.xpose.msra.mxu0 0
    %537 = vmatprep.mubr.bf16.mxu0 0
    %538 = vmatmul.mubr.bf16.gmra.mxu0 %v500
    %v539 = vpop.f32.mrf.mxu0
    %v540 = vadd.f32 0.0, %v539
    %v541 = vpop.f32.mrf.mxu0
    %v542 = vpop.f32.mrf.mxu0
    %v543 = vadd.f32 0.0, %v542
    %v544 = vpop.f32.mrf.mxu0
    %545 = vdwg.mxu0
    %v547 = vsel %vm498, %v445, 0
    %v550 = vsel %vm498, %v447, 0
    %552 = vmatprep.subr.bf16.mxu0 0
    %553 = vmatpush1.bf16.xpose.msra.mxu0 0
    %554 = vmatprep.subr.bf16.mxu0 0
    %555 = vmatpush1.bf16.xpose.msra.mxu0 0
    %556 = vmatprep.subr.bf16.mxu0 0
    %557 = vmatpush1.bf16.xpose.msra.mxu0 0
    %558 = vmatprep.subr.bf16.mxu0 0
    %559 = vmatpush1.bf16.xpose.msra.mxu0 0
    %560 = vmatprep.subr.bf16.mxu0 0
    %561 = vmatpush1.bf16.xpose.msra.mxu0 0
    %562 = vmatprep.subr.bf16.mxu0 0
    %563 = vmatpush1.bf16.xpose.msra.mxu0 0
    %564 = vmatprep.subr.bf16.mxu0 0
    %565 = vmatpush1.bf16.xpose.msra.mxu0 0
    %566 = vmatprep.subr.bf16.mxu0 0
    %567 = vmatpush1.bf16.xpose.msra.mxu0 %v550
    %568 = vmatprep.subr.bf16.mxu0 0
    %569 = vmatpush2.bf16.xpose.msra.mxu0 0
    %570 = vmatprep.subr.bf16.mxu0 0
    %571 = vmatpush2.bf16.xpose.msra.mxu0 0
    %572 = vmatprep.subr.bf16.mxu0 0
    %573 = vmatpush2.bf16.xpose.msra.mxu0 0
    %574 = vmatprep.subr.bf16.mxu0 0
    %575 = vmatpush2.bf16.xpose.msra.mxu0 0
    %576 = vmatprep.subr.bf16.mxu0 0
    %577 = vmatpush2.bf16.xpose.msra.mxu0 0
    %578 = vmatprep.subr.bf16.mxu0 0
    %579 = vmatpush2.bf16.xpose.msra.mxu0 0
    %580 = vmatprep.subr.bf16.mxu0 0
    %581 = vmatpush2.bf16.xpose.msra.mxu0 0
    %582 = vmatprep.subr.bf16.mxu0 0
    %583 = vmatpush2.bf16.xpose.msra.mxu0 0
    %584 = vmatprep.mubr.bf16.mxu0 0
    %585 = vmatmul.mubr.bf16.gmra.mxu0 %v547
    %v586 = vpop.f32.mrf.mxu0
    %v587 = vadd.f32 0.0, %v586
    %v588 = vpop.f32.mrf.mxu0
    %v589 = vpop.f32.mrf.mxu0
    %v590 = vadd.f32 0.0, %v589
    %v591 = vpop.f32.mrf.mxu0
    %592 = vdwg.mxu0
    %v594 = vsel %vm498, %v452, 0
    %v597 = vsel %vm498, %v466, 0
    %599 = vmatprep.subr.bf16.mxu0 0
    %600 = vmatpush1.bf16.xpose.msra.mxu0 0
    %601 = vmatprep.subr.bf16.mxu0 0
    %602 = vmatpush1.bf16.xpose.msra.mxu0 0
    %603 = vmatprep.subr.bf16.mxu0 0
    %604 = vmatpush1.bf16.xpose.msra.mxu0 0
    %605 = vmatprep.subr.bf16.mxu0 0
    %606 = vmatpush1.bf16.xpose.msra.mxu0 0
    %607 = vmatprep.subr.bf16.mxu0 0
    %608 = vmatpush1.bf16.xpose.msra.mxu0 0
    %609 = vmatprep.subr.bf16.mxu0 0
    %610 = vmatpush1.bf16.xpose.msra.mxu0 0
    %611 = vmatprep.subr.bf16.mxu0 0
    %612 = vmatpush1.bf16.xpose.msra.mxu0 0
    %613 = vmatprep.subr.bf16.mxu0 0
    %614 = vmatpush1.bf16.xpose.msra.mxu0 %v597
    %615 = vmatprep.subr.bf16.mxu0 0
    %616 = vmatpush2.bf16.xpose.msra.mxu0 0
    %617 = vmatprep.subr.bf16.mxu0 0
    %618 = vmatpush2.bf16.xpose.msra.mxu0 0
    %619 = vmatprep.subr.bf16.mxu0 0
    %620 = vmatpush2.bf16.xpose.msra.mxu0 0
    %621 = vmatprep.subr.bf16.mxu0 0
    %622 = vmatpush2.bf16.xpose.msra.mxu0 0
    %623 = vmatprep.subr.bf16.mxu0 0
    %624 = vmatpush2.bf16.xpose.msra.mxu0 0
    %625 = vmatprep.subr.bf16.mxu0 0
    %626 = vmatpush2.bf16.xpose.msra.mxu0 0
    %627 = vmatprep.subr.bf16.mxu0 0
    %628 = vmatpush2.bf16.xpose.msra.mxu0 0
    %629 = vmatprep.subr.bf16.mxu0 0
    %630 = vmatpush2.bf16.xpose.msra.mxu0 0
    %631 = vmatprep.mubr.bf16.mxu0 0
    %632 = vmatmul.mubr.bf16.gmra.mxu0 %v594
    %v633 = vpop.f32.mrf.mxu0
    %v634 = vadd.f32 0.0, %v633
    %v635 = vpop.f32.mrf.mxu0
    %v636 = vpop.f32.mrf.mxu0
    %v637 = vadd.f32 0.0, %v636
    %v638 = vpop.f32.mrf.mxu0
    %639 = vdwg.mxu0
    %v641 = vsel %vm498, %v455, 0
    %v644 = vsel %vm498, %v469, 0
    %646 = vmatprep.subr.bf16.mxu0 0
    %647 = vmatpush1.bf16.xpose.msra.mxu0 0
    %648 = vmatprep.subr.bf16.mxu0 0
    %649 = vmatpush1.bf16.xpose.msra.mxu0 0
    %650 = vmatprep.subr.bf16.mxu0 0
    %651 = vmatpush1.bf16.xpose.msra.mxu0 0
    %652 = vmatprep.subr.bf16.mxu0 0
    %653 = vmatpush1.bf16.xpose.msra.mxu0 0
    %654 = vmatprep.subr.bf16.mxu0 0
    %655 = vmatpush1.bf16.xpose.msra.mxu0 0
    %656 = vmatprep.subr.bf16.mxu0 0
    %657 = vmatpush1.bf16.xpose.msra.mxu0 0
    %658 = vmatprep.subr.bf16.mxu0 0
    %659 = vmatpush1.bf16.xpose.msra.mxu0 0
    %660 = vmatprep.subr.bf16.mxu0 0
    %661 = vmatpush1.bf16.xpose.msra.mxu0 %v644
    %662 = vmatprep.subr.bf16.mxu0 0
    %663 = vmatpush2.bf16.xpose.msra.mxu0 0
    %664 = vmatprep.subr.bf16.mxu0 0
    %665 = vmatpush2.bf16.xpose.msra.mxu0 0
    %666 = vmatprep.subr.bf16.mxu0 0
    %667 = vmatpush2.bf16.xpose.msra.mxu0 0
    %668 = vmatprep.subr.bf16.mxu0 0
    %669 = vmatpush2.bf16.xpose.msra.mxu0 0
    %670 = vmatprep.subr.bf16.mxu0 0
    %671 = vmatpush2.bf16.xpose.msra.mxu0 0
    %672 = vmatprep.subr.bf16.mxu0 0
    %673 = vmatpush2.bf16.xpose.msra.mxu0 0
    %674 = vmatprep.subr.bf16.mxu0 0
    %675 = vmatpush2.bf16.xpose.msra.mxu0 0
    %676 = vmatprep.subr.bf16.mxu0 0
    %677 = vmatpush2.bf16.xpose.msra.mxu0 0
    %678 = vmatprep.mubr.bf16.mxu0 0
    %679 = vmatmul.mubr.bf16.gmra.mxu0 %v641
    %v680 = vpop.f32.mrf.mxu0
    %v681 = vadd.f32 0.0, %v680
    %v682 = vpop.f32.mrf.mxu0
    %v683 = vpop.f32.mrf.mxu0
    %v684 = vadd.f32 0.0, %v683
    %v685 = vpop.f32.mrf.mxu0
    %686 = vdwg.mxu0
    %v688 = vsel %vm498, %v457, 0
    %v691 = vsel %vm498, %v471, 0
    %693 = vmatprep.subr.bf16.mxu0 0
    %694 = vmatpush1.bf16.xpose.msra.mxu0 0
    %695 = vmatprep.subr.bf16.mxu0 0
    %696 = vmatpush1.bf16.xpose.msra.mxu0 0
    %697 = vmatprep.subr.bf16.mxu0 0
    %698 = vmatpush1.bf16.xpose.msra.mxu0 0
    %699 = vmatprep.subr.bf16.mxu0 0
    %700 = vmatpush1.bf16.xpose.msra.mxu0 0
    %701 = vmatprep.subr.bf16.mxu0 0
    %702 = vmatpush1.bf16.xpose.msra.mxu0 0
    %703 = vmatprep.subr.bf16.mxu0 0
    %704 = vmatpush1.bf16.xpose.msra.mxu0 0
    %705 = vmatprep.subr.bf16.mxu0 0
    %706 = vmatpush1.bf16.xpose.msra.mxu0 0
    %707 = vmatprep.subr.bf16.mxu0 0
    %708 = vmatpush1.bf16.xpose.msra.mxu0 %v691
    %709 = vmatprep.subr.bf16.mxu0 0
    %710 = vmatpush2.bf16.xpose.msra.mxu0 0
    %711 = vmatprep.subr.bf16.mxu0 0
    %712 = vmatpush2.bf16.xpose.msra.mxu0 0
    %713 = vmatprep.subr.bf16.mxu0 0
    %714 = vmatpush2.bf16.xpose.msra.mxu0 0
    %715 = vmatprep.subr.bf16.mxu0 0
    %716 = vmatpush2.bf16.xpose.msra.mxu0 0
    %717 = vmatprep.subr.bf16.mxu0 0
    %718 = vmatpush2.bf16.xpose.msra.mxu0 0
    %719 = vmatprep.subr.bf16.mxu0 0
    %720 = vmatpush2.bf16.xpose.msra.mxu0 0
    %721 = vmatprep.subr.bf16.mxu0 0
    %722 = vmatpush2.bf16.xpose.msra.mxu0 0
    %723 = vmatprep.subr.bf16.mxu0 0
    %724 = vmatpush2.bf16.xpose.msra.mxu0 0
    %725 = vmatprep.mubr.bf16.mxu0 0
    %726 = vmatmul.mubr.bf16.gmra.mxu0 %v688
    %v727 = vpop.f32.mrf.mxu0
    %v728 = vadd.f32 0.0, %v727
    %v729 = vpop.f32.mrf.mxu0
    %v730 = vpop.f32.mrf.mxu0
    %v731 = vadd.f32 0.0, %v730
    %v732 = vpop.f32.mrf.mxu0
    %733 = vdwg.mxu0
    %v735 = vsel %vm498, %v459, 0
    %v738 = vsel %vm498, %v473, 0
    %740 = vmatprep.subr.bf16.mxu0 0
    %741 = vmatpush1.bf16.xpose.msra.mxu0 0
    %742 = vmatprep.subr.bf16.mxu0 0
    %743 = vmatpush1.bf16.xpose.msra.mxu0 0
    %744 = vmatprep.subr.bf16.mxu0 0
    %745 = vmatpush1.bf16.xpose.msra.mxu0 0
    %746 = vmatprep.subr.bf16.mxu0 0
    %747 = vmatpush1.bf16.xpose.msra.mxu0 0
    %748 = vmatprep.subr.bf16.mxu0 0
    %749 = vmatpush1.bf16.xpose.msra.mxu0 0
    %750 = vmatprep.subr.bf16.mxu0 0
    %751 = vmatpush1.bf16.xpose.msra.mxu0 0
    %752 = vmatprep.subr.bf16.mxu0 0
    %753 = vmatpush1.bf16.xpose.msra.mxu0 0
    %754 = vmatprep.subr.bf16.mxu0 0
    %755 = vmatpush1.bf16.xpose.msra.mxu0 %v738
    %756 = vmatprep.subr.bf16.mxu0 0
    %757 = vmatpush2.bf16.xpose.msra.mxu0 0
    %758 = vmatprep.subr.bf16.mxu0 0
    %759 = vmatpush2.bf16.xpose.msra.mxu0 0
    %760 = vmatprep.subr.bf16.mxu0 0
    %761 = vmatpush2.bf16.xpose.msra.mxu0 0
    %762 = vmatprep.subr.bf16.mxu0 0
    %763 = vmatpush2.bf16.xpose.msra.mxu0 0
    %764 = vmatprep.subr.bf16.mxu0 0
    %765 = vmatpush2.bf16.xpose.msra.mxu0 0
    %766 = vmatprep.subr.bf16.mxu0 0
    %767 = vmatpush2.bf16.xpose.msra.mxu0 0
    %768 = vmatprep.subr.bf16.mxu0 0
    %769 = vmatpush2.bf16.xpose.msra.mxu0 0
    %770 = vmatprep.subr.bf16.mxu0 0
    %771 = vmatpush2.bf16.xpose.msra.mxu0 0
    %772 = vmatprep.mubr.bf16.mxu0 0
    %773 = vmatmul.mubr.bf16.gmra.mxu0 %v735
    %v774 = vpop.f32.mrf.mxu0
    %v775 = vadd.f32 0.0, %v774
    %v776 = vpop.f32.mrf.mxu0
    %v777 = vpop.f32.mrf.mxu0
    %v778 = vadd.f32 0.0, %v777
    %v779 = vpop.f32.mrf.mxu0
    %780 = vdwg.mxu0
    %v782 = vsel %vm498, %v461, 0
    %v785 = vsel %vm498, %v475, 0
    %787 = vmatprep.subr.bf16.mxu0 0
    %788 = vmatpush1.bf16.xpose.msra.mxu0 0
    %789 = vmatprep.subr.bf16.mxu0 0
    %790 = vmatpush1.bf16.xpose.msra.mxu0 0
    %791 = vmatprep.subr.bf16.mxu0 0
    %792 = vmatpush1.bf16.xpose.msra.mxu0 0
    %793 = vmatprep.subr.bf16.mxu0 0
    %794 = vmatpush1.bf16.xpose.msra.mxu0 0
    %795 = vmatprep.subr.bf16.mxu0 0
    %796 = vmatpush1.bf16.xpose.msra.mxu0 0
    %797 = vmatprep.subr.bf16.mxu0 0
    %798 = vmatpush1.bf16.xpose.msra.mxu0 0
    %799 = vmatprep.subr.bf16.mxu0 0
    %800 = vmatpush1.bf16.xpose.msra.mxu0 0
    %801 = vmatprep.subr.bf16.mxu0 0
    %802 = vmatpush1.bf16.xpose.msra.mxu0 %v785
    %803 = vmatprep.subr.bf16.mxu0 0
    %804 = vmatpush2.bf16.xpose.msra.mxu0 0
    %805 = vmatprep.subr.bf16.mxu0 0
    %806 = vmatpush2.bf16.xpose.msra.mxu0 0
    %807 = vmatprep.subr.bf16.mxu0 0
    %808 = vmatpush2.bf16.xpose.msra.mxu0 0
    %809 = vmatprep.subr.bf16.mxu0 0
    %810 = vmatpush2.bf16.xpose.msra.mxu0 0
    %811 = vmatprep.subr.bf16.mxu0 0
    %812 = vmatpush2.bf16.xpose.msra.mxu0 0
    %813 = vmatprep.subr.bf16.mxu0 0
    %814 = vmatpush2.bf16.xpose.msra.mxu0 0
    %815 = vmatprep.subr.bf16.mxu0 0
    %816 = vmatpush2.bf16.xpose.msra.mxu0 0
    %817 = vmatprep.subr.bf16.mxu0 0
    %818 = vmatpush2.bf16.xpose.msra.mxu0 0
    %819 = vmatprep.mubr.bf16.mxu0 0
    %820 = vmatmul.mubr.bf16.gmra.mxu0 %v782
    %v821 = vpop.f32.mrf.mxu0
    %v822 = vadd.f32 0.0, %v821
    %v823 = vpop.f32.mrf.mxu0
    %v824 = vpop.f32.mrf.mxu0
    %v825 = vadd.f32 0.0, %v824
    %v826 = vpop.f32.mrf.mxu0
    %827 = vdwg.mxu0
    %v829 = vsel %vm498, %v463, 0
    %v832 = vsel %vm498, %v477, 0
    %834 = vmatprep.subr.bf16.mxu0 0
    %835 = vmatpush1.bf16.xpose.msra.mxu0 0
    %836 = vmatprep.subr.bf16.mxu0 0
    %837 = vmatpush1.bf16.xpose.msra.mxu0 0
    %838 = vmatprep.subr.bf16.mxu0 0
    %839 = vmatpush1.bf16.xpose.msra.mxu0 0
    %840 = vmatprep.subr.bf16.mxu0 0
    %841 = vmatpush1.bf16.xpose.msra.mxu0 0
    %842 = vmatprep.subr.bf16.mxu0 0
    %843 = vmatpush1.bf16.xpose.msra.mxu0 0
    %844 = vmatprep.subr.bf16.mxu0 0
    %845 = vmatpush1.bf16.xpose.msra.mxu0 0
    %846 = vmatprep.subr.bf16.mxu0 0
    %847 = vmatpush1.bf16.xpose.msra.mxu0 0
    %848 = vmatprep.subr.bf16.mxu0 0
    %849 = vmatpush1.bf16.xpose.msra.mxu0 %v832
    %850 = vmatprep.subr.bf16.mxu0 0
    %851 = vmatpush2.bf16.xpose.msra.mxu0 0
    %852 = vmatprep.subr.bf16.mxu0 0
    %853 = vmatpush2.bf16.xpose.msra.mxu0 0
    %854 = vmatprep.subr.bf16.mxu0 0
    %855 = vmatpush2.bf16.xpose.msra.mxu0 0
    %856 = vmatprep.subr.bf16.mxu0 0
    %857 = vmatpush2.bf16.xpose.msra.mxu0 0
    %858 = vmatprep.subr.bf16.mxu0 0
    %859 = vmatpush2.bf16.xpose.msra.mxu0 0
    %860 = vmatprep.subr.bf16.mxu0 0
    %861 = vmatpush2.bf16.xpose.msra.mxu0 0
    %862 = vmatprep.subr.bf16.mxu0 0
    %863 = vmatpush2.bf16.xpose.msra.mxu0 0
    %864 = vmatprep.subr.bf16.mxu0 0
    %865 = vmatpush2.bf16.xpose.msra.mxu0 0
    %866 = vmatprep.mubr.bf16.mxu0 0
    %867 = vmatmul.mubr.bf16.gmra.mxu0 %v829
    %v868 = vpop.f32.mrf.mxu0
    %v869 = vadd.f32 0.0, %v868
    %v870 = vpop.f32.mrf.mxu0
    %v871 = vpop.f32.mrf.mxu0
    %v872 = vadd.f32 0.0, %v871
    %v873 = vpop.f32.mrf.mxu0
    %874 = vdwg.mxu0
    %vm875 = vcmask 130048
    %v876 = vsel %vm875, %v540, -inf
    %877 = vmax.xlane.f32.xlu0 %v876
    %v878 = vpop.xlane.xlu0 %877
    %v879 = vsel %vm875, %v543, -inf
    %880 = vmax.xlane.f32.xlu0 %v879
    %v881 = vpop.xlane.xlu0 %880
    %v882 = vsel %vm875, %v587, -inf
    %883 = vmax.xlane.f32.xlu0 %v882
    %v884 = vpop.xlane.xlu0 %883
    %v885 = vsel %vm875, %v590, -inf
    %886 = vmax.xlane.f32.xlu0 %v885
    %v887 = vpop.xlane.xlu0 %886
    %v888 = vsel %vm875, %v634, -inf
    %889 = vmax.xlane.f32.xlu0 %v888
    %v890 = vpop.xlane.xlu0 %889
    %v891 = vsel %vm875, %v637, -inf
    %892 = vmax.xlane.f32.xlu0 %v891
    %v893 = vpop.xlane.xlu0 %892
    %v894 = vsel %vm875, %v681, -inf
    %895 = vmax.xlane.f32.xlu0 %v894
    %v896 = vpop.xlane.xlu0 %895
    %v897 = vsel %vm875, %v684, -inf
    %898 = vmax.xlane.f32.xlu0 %v897
    %v899 = vpop.xlane.xlu0 %898
    %v900 = vsel %vm875, %v728, -inf
    %901 = vmax.xlane.f32.xlu0 %v900
    %v902 = vpop.xlane.xlu0 %901
    %v903 = vsel %vm875, %v731, -inf
    %904 = vmax.xlane.f32.xlu0 %v903
    %v905 = vpop.xlane.xlu0 %904
    %v906 = vsel %vm875, %v775, -inf
    %907 = vmax.xlane.f32.xlu0 %v906
    %v908 = vpop.xlane.xlu0 %907
    %v909 = vsel %vm875, %v778, -inf
    %910 = vmax.xlane.f32.xlu0 %v909
    %v911 = vpop.xlane.xlu0 %910
    %v912 = vsel %vm875, %v822, -inf
    %913 = vmax.xlane.f32.xlu0 %v912
    %v914 = vpop.xlane.xlu0 %913
    %v915 = vsel %vm875, %v825, -inf
    %916 = vmax.xlane.f32.xlu0 %v915
    %v917 = vpop.xlane.xlu0 %916
    %v918 = vsel %vm875, %v869, -inf
    %919 = vmax.xlane.f32.xlu0 %v918
    %v920 = vpop.xlane.xlu0 %919
    %v921 = vsel %vm875, %v872, -inf
    %922 = vmax.xlane.f32.xlu0 %v921
    %v923 = vpop.xlane.xlu0 %922
    %v924 = vsub.f32 %v540, %v878
    %v925 = vsub.f32 %v543, %v881
    %v926 = vsub.f32 %v587, %v884
    %v927 = vsub.f32 %v590, %v887
    %v928 = vsub.f32 %v634, %v890
    %v929 = vsub.f32 %v637, %v893
    %v930 = vsub.f32 %v681, %v896
    %v931 = vsub.f32 %v684, %v899
    %v932 = vsub.f32 %v728, %v902
    %v933 = vsub.f32 %v731, %v905
    %v934 = vsub.f32 %v775, %v908
    %v935 = vsub.f32 %v778, %v911
    %v936 = vsub.f32 %v822, %v914
    %v937 = vsub.f32 %v825, %v917
    %v938 = vsub.f32 %v869, %v920
    %v939 = vsub.f32 %v872, %v923
    %v940 = vmul.f32 %v924, 1.442695
    %v941 = vpow.pop %v940
    %v942 = vmul.f32 %v925, 1.442695
    %v943 = vpow.pop %v942
    %v944 = vmul.f32 %v926, 1.442695
    %v945 = vpow.pop %v944
    %v946 = vmul.f32 %v927, 1.442695
    %v947 = vpow.pop %v946
    %v948 = vmul.f32 %v928, 1.442695
    %v949 = vpow.pop %v948
    %v950 = vmul.f32 %v929, 1.442695
    %v951 = vpow.pop %v950
    %v952 = vmul.f32 %v930, 1.442695
    %v953 = vpow.pop %v952
    %v954 = vmul.f32 %v931, 1.442695
    %v955 = vpow.pop %v954
    %v956 = vmul.f32 %v932, 1.442695
    %v957 = vpow.pop %v956
    %v958 = vmul.f32 %v933, 1.442695
    %v959 = vpow.pop %v958
    %v960 = vmul.f32 %v934, 1.442695
    %v961 = vpow.pop %v960
    %v962 = vmul.f32 %v935, 1.442695
    %v963 = vpow.pop %v962
    %v964 = vmul.f32 %v936, 1.442695
    %v965 = vpow.pop %v964
    %v966 = vmul.f32 %v937, 1.442695
    %v967 = vpow.pop %v966
    %v968 = vmul.f32 %v938, 1.442695
    %v969 = vpow.pop %v968
    %v970 = vmul.f32 %v939, 1.442695
    %v971 = vpow.pop %v970
    %v972 = vsel %vm875, %v941, 0.0
    %973 = vadd.xlane.f32.xlu0 %v972
    %v974 = vpop.xlane.xlu0 %973
    %v975 = vsel %vm875, %v943, 0.0
    %976 = vadd.xlane.f32.xlu0 %v975
    %v977 = vpop.xlane.xlu0 %976
    %v978 = vsel %vm875, %v945, 0.0
    %979 = vadd.xlane.f32.xlu0 %v978
    %v980 = vpop.xlane.xlu0 %979
    %v981 = vsel %vm875, %v947, 0.0
    %982 = vadd.xlane.f32.xlu0 %v981
    %v983 = vpop.xlane.xlu0 %982
    %v984 = vsel %vm875, %v949, 0.0
    %985 = vadd.xlane.f32.xlu0 %v984
    %v986 = vpop.xlane.xlu0 %985
    %v987 = vsel %vm875, %v951, 0.0
    %988 = vadd.xlane.f32.xlu0 %v987
    %v989 = vpop.xlane.xlu0 %988
    %v990 = vsel %vm875, %v953, 0.0
    %991 = vadd.xlane.f32.xlu0 %v990
    %v992 = vpop.xlane.xlu0 %991
    %v993 = vsel %vm875, %v955, 0.0
    %994 = vadd.xlane.f32.xlu0 %v993
    %v995 = vpop.xlane.xlu0 %994
    %v996 = vsel %vm875, %v957, 0.0
    %997 = vadd.xlane.f32.xlu0 %v996
    %v998 = vpop.xlane.xlu0 %997
    %v999 = vsel %vm875, %v959, 0.0
    %1000 = vadd.xlane.f32.xlu0 %v999
    %v1001 = vpop.xlane.xlu0 %1000
    %v1002 = vsel %vm875, %v961, 0.0
    %1003 = vadd.xlane.f32.xlu0 %v1002
    %v1004 = vpop.xlane.xlu0 %1003
    %v1005 = vsel %vm875, %v963, 0.0
    %1006 = vadd.xlane.f32.xlu0 %v1005
    %v1007 = vpop.xlane.xlu0 %1006
    %v1008 = vsel %vm875, %v965, 0.0
    %1009 = vadd.xlane.f32.xlu0 %v1008
    %v1010 = vpop.xlane.xlu0 %1009
    %v1011 = vsel %vm875, %v967, 0.0
    %1012 = vadd.xlane.f32.xlu0 %v1011
    %v1013 = vpop.xlane.xlu0 %1012
    %v1014 = vsel %vm875, %v969, 0.0
    %1015 = vadd.xlane.f32.xlu0 %v1014
    %v1016 = vpop.xlane.xlu0 %1015
    %v1017 = vsel %vm875, %v971, 0.0
    %1018 = vadd.xlane.f32.xlu0 %v1017
    %v1019 = vpop.xlane.xlu0 %1018
    %v1020 = vrcp.pop %v974
    %v1021 = vrcp.pop %v977
    %v1022 = vrcp.pop %v980
    %v1023 = vrcp.pop %v983
    %v1024 = vrcp.pop %v986
    %v1025 = vrcp.pop %v989
    %v1026 = vrcp.pop %v992
    %v1027 = vrcp.pop %v995
    %v1028 = vrcp.pop %v998
    %v1029 = vrcp.pop %v1001
    %v1030 = vrcp.pop %v1004
    %v1031 = vrcp.pop %v1007
    %v1032 = vrcp.pop %v1010
    %v1033 = vrcp.pop %v1013
    %v1034 = vrcp.pop %v1016
    %v1035 = vrcp.pop %v1019
    %v1036 = vmul.f32 %v941, %v1020
    %v1037 = vmul.f32 %v943, %v1021
    %v1038 = vmul.f32 %v945, %v1022
    %v1039 = vmul.f32 %v947, %v1023
    %v1040 = vmul.f32 %v949, %v1024
    %v1041 = vmul.f32 %v951, %v1025
    %v1042 = vmul.f32 %v953, %v1026
    %v1043 = vmul.f32 %v955, %v1027
    %v1044 = vmul.f32 %v957, %v1028
    %v1045 = vmul.f32 %v959, %v1029
    %v1046 = vmul.f32 %v961, %v1030
    %v1047 = vmul.f32 %v963, %v1031
    %v1048 = vmul.f32 %v965, %v1032
    %v1049 = vmul.f32 %v967, %v1033
    %v1050 = vmul.f32 %v969, %v1034
    %v1051 = vmul.f32 %v971, %v1035
    %v1052 = vpack.c.bf16 %v1037, %v1036
    %v1053 = vpack.c.bf16 %v1039, %v1038
    %v1054 = vpack.c.bf16 %v1041, %v1040
    %v1055 = vpack.c.bf16 %v1043, %v1042
    %v1056 = vpack.c.bf16 %v1045, %v1044
    %v1057 = vpack.c.bf16 %v1047, %v1046
    %v1058 = vpack.c.bf16 %v1049, %v1048
    %v1059 = vpack.c.bf16 %v1051, %v1050
    %v1061 = vsel %vm875, %v1052, 0
    %1063 = vmatprep.subr.bf16.mxu0 0
    %1064 = vmatpush1.bf16.msra.mxu0 0
    %1065 = vmatprep.subr.bf16.mxu0 0
    %1066 = vmatpush1.bf16.msra.mxu0 0
    %1067 = vmatprep.subr.bf16.mxu0 0
    %1068 = vmatpush1.bf16.msra.mxu0 0
    %1069 = vmatprep.subr.bf16.mxu0 0
    %1070 = vmatpush1.bf16.msra.mxu0 0
    %1071 = vmatprep.subr.bf16.mxu0 0
    %1072 = vmatpush1.bf16.msra.mxu0 0
    %1073 = vmatprep.subr.bf16.mxu0 0
    %1074 = vmatpush1.bf16.msra.mxu0 0
    %1075 = vmatprep.subr.bf16.mxu0 0
    %1076 = vmatpush1.bf16.msra.mxu0 0
    %1077 = vmatprep.subr.bf16.mxu0 0
    %1078 = vmatpush1.bf16.msra.mxu0 %v448
    %1079 = vmatprep.subr.bf16.mxu0 0
    %1080 = vmatpush2.bf16.msra.mxu0 0
    %1081 = vmatprep.subr.bf16.mxu0 0
    %1082 = vmatpush2.bf16.msra.mxu0 0
    %1083 = vmatprep.subr.bf16.mxu0 0
    %1084 = vmatpush2.bf16.msra.mxu0 0
    %1085 = vmatprep.subr.bf16.mxu0 0
    %1086 = vmatpush2.bf16.msra.mxu0 0
    %1087 = vmatprep.subr.bf16.mxu0 0
    %1088 = vmatpush2.bf16.msra.mxu0 0
    %1089 = vmatprep.subr.bf16.mxu0 0
    %1090 = vmatpush2.bf16.msra.mxu0 0
    %1091 = vmatprep.subr.bf16.mxu0 0
    %1092 = vmatpush2.bf16.msra.mxu0 0
    %1093 = vmatprep.subr.bf16.mxu0 0
    %1094 = vmatpush2.bf16.msra.mxu0 0
    %1095 = vmatprep.mubr.bf16.mxu0 0
    %1096 = vmatmul.mubr.bf16.gmra.mxu0 %v1061
    %v1097 = vpop.f32.mrf.mxu0
    %v1098 = vadd.f32 0.0, %v1097
    %v1099 = vpop.f32.mrf.mxu0
    %v1100 = vpop.f32.mrf.mxu0
    %v1101 = vadd.f32 0.0, %v1100
    %v1102 = vpop.f32.mrf.mxu0
    %1103 = vdwg.mxu0
    %v1105 = vsel %vm875, %v1053, 0
    %1107 = vmatprep.subr.bf16.mxu0 0
    %1108 = vmatpush1.bf16.msra.mxu0 0
    %1109 = vmatprep.subr.bf16.mxu0 0
    %1110 = vmatpush1.bf16.msra.mxu0 0
    %1111 = vmatprep.subr.bf16.mxu0 0
    %1112 = vmatpush1.bf16.msra.mxu0 0
    %1113 = vmatprep.subr.bf16.mxu0 0
    %1114 = vmatpush1.bf16.msra.mxu0 0
    %1115 = vmatprep.subr.bf16.mxu0 0
    %1116 = vmatpush1.bf16.msra.mxu0 0
    %1117 = vmatprep.subr.bf16.mxu0 0
    %1118 = vmatpush1.bf16.msra.mxu0 0
    %1119 = vmatprep.subr.bf16.mxu0 0
    %1120 = vmatpush1.bf16.msra.mxu0 0
    %1121 = vmatprep.subr.bf16.mxu0 0
    %1122 = vmatpush1.bf16.msra.mxu0 %v449
    %1123 = vmatprep.subr.bf16.mxu0 0
    %1124 = vmatpush2.bf16.msra.mxu0 0
    %1125 = vmatprep.subr.bf16.mxu0 0
    %1126 = vmatpush2.bf16.msra.mxu0 0
    %1127 = vmatprep.subr.bf16.mxu0 0
    %1128 = vmatpush2.bf16.msra.mxu0 0
    %1129 = vmatprep.subr.bf16.mxu0 0
    %1130 = vmatpush2.bf16.msra.mxu0 0
    %1131 = vmatprep.subr.bf16.mxu0 0
    %1132 = vmatpush2.bf16.msra.mxu0 0
    %1133 = vmatprep.subr.bf16.mxu0 0
    %1134 = vmatpush2.bf16.msra.mxu0 0
    %1135 = vmatprep.subr.bf16.mxu0 0
    %1136 = vmatpush2.bf16.msra.mxu0 0
    %1137 = vmatprep.subr.bf16.mxu0 0
    %1138 = vmatpush2.bf16.msra.mxu0 0
    %1139 = vmatprep.mubr.bf16.mxu0 0
    %1140 = vmatmul.mubr.bf16.gmra.mxu0 %v1105
    %v1141 = vpop.f32.mrf.mxu0
    %v1142 = vadd.f32 0.0, %v1141
    %v1143 = vpop.f32.mrf.mxu0
    %v1144 = vpop.f32.mrf.mxu0
    %v1145 = vadd.f32 0.0, %v1144
    %v1146 = vpop.f32.mrf.mxu0
    %1147 = vdwg.mxu0
    %v1149 = vsel %vm875, %v1054, 0
    %1151 = vmatprep.subr.bf16.mxu0 0
    %1152 = vmatpush1.bf16.msra.mxu0 0
    %1153 = vmatprep.subr.bf16.mxu0 0
    %1154 = vmatpush1.bf16.msra.mxu0 0
    %1155 = vmatprep.subr.bf16.mxu0 0
    %1156 = vmatpush1.bf16.msra.mxu0 0
    %1157 = vmatprep.subr.bf16.mxu0 0
    %1158 = vmatpush1.bf16.msra.mxu0 0
    %1159 = vmatprep.subr.bf16.mxu0 0
    %1160 = vmatpush1.bf16.msra.mxu0 0
    %1161 = vmatprep.subr.bf16.mxu0 0
    %1162 = vmatpush1.bf16.msra.mxu0 0
    %1163 = vmatprep.subr.bf16.mxu0 0
    %1164 = vmatpush1.bf16.msra.mxu0 0
    %1165 = vmatprep.subr.bf16.mxu0 0
    %1166 = vmatpush1.bf16.msra.mxu0 %v480
    %1167 = vmatprep.subr.bf16.mxu0 0
    %1168 = vmatpush2.bf16.msra.mxu0 0
    %1169 = vmatprep.subr.bf16.mxu0 0
    %1170 = vmatpush2.bf16.msra.mxu0 0
    %1171 = vmatprep.subr.bf16.mxu0 0
    %1172 = vmatpush2.bf16.msra.mxu0 0
    %1173 = vmatprep.subr.bf16.mxu0 0
    %1174 = vmatpush2.bf16.msra.mxu0 0
    %1175 = vmatprep.subr.bf16.mxu0 0
    %1176 = vmatpush2.bf16.msra.mxu0 0
    %1177 = vmatprep.subr.bf16.mxu0 0
    %1178 = vmatpush2.bf16.msra.mxu0 0
    %1179 = vmatprep.subr.bf16.mxu0 0
    %1180 = vmatpush2.bf16.msra.mxu0 0
    %1181 = vmatprep.subr.bf16.mxu0 0
    %1182 = vmatpush2.bf16.msra.mxu0 0
    %1183 = vmatprep.mubr.bf16.mxu0 0
    %1184 = vmatmul.mubr.bf16.gmra.mxu0 %v1149
    %v1185 = vpop.f32.mrf.mxu0
    %v1186 = vadd.f32 0.0, %v1185
    %v1187 = vpop.f32.mrf.mxu0
    %v1188 = vpop.f32.mrf.mxu0
    %v1189 = vadd.f32 0.0, %v1188
    %v1190 = vpop.f32.mrf.mxu0
    %1191 = vdwg.mxu0
    %v1193 = vsel %vm875, %v1055, 0
    %1195 = vmatprep.subr.bf16.mxu0 0
    %1196 = vmatpush1.bf16.msra.mxu0 0
    %1197 = vmatprep.subr.bf16.mxu0 0
    %1198 = vmatpush1.bf16.msra.mxu0 0
    %1199 = vmatprep.subr.bf16.mxu0 0
    %1200 = vmatpush1.bf16.msra.mxu0 0
    %1201 = vmatprep.subr.bf16.mxu0 0
    %1202 = vmatpush1.bf16.msra.mxu0 0
    %1203 = vmatprep.subr.bf16.mxu0 0
    %1204 = vmatpush1.bf16.msra.mxu0 0
    %1205 = vmatprep.subr.bf16.mxu0 0
    %1206 = vmatpush1.bf16.msra.mxu0 0
    %1207 = vmatprep.subr.bf16.mxu0 0
    %1208 = vmatpush1.bf16.msra.mxu0 0
    %1209 = vmatprep.subr.bf16.mxu0 0
    %1210 = vmatpush1.bf16.msra.mxu0 %v484
    %1211 = vmatprep.subr.bf16.mxu0 0
    %1212 = vmatpush2.bf16.msra.mxu0 0
    %1213 = vmatprep.subr.bf16.mxu0 0
    %1214 = vmatpush2.bf16.msra.mxu0 0
    %1215 = vmatprep.subr.bf16.mxu0 0
    %1216 = vmatpush2.bf16.msra.mxu0 0
    %1217 = vmatprep.subr.bf16.mxu0 0
    %1218 = vmatpush2.bf16.msra.mxu0 0
    %1219 = vmatprep.subr.bf16.mxu0 0
    %1220 = vmatpush2.bf16.msra.mxu0 0
    %1221 = vmatprep.subr.bf16.mxu0 0
    %1222 = vmatpush2.bf16.msra.mxu0 0
    %1223 = vmatprep.subr.bf16.mxu0 0
    %1224 = vmatpush2.bf16.msra.mxu0 0
    %1225 = vmatprep.subr.bf16.mxu0 0
    %1226 = vmatpush2.bf16.msra.mxu0 0
    %1227 = vmatprep.mubr.bf16.mxu0 0
    %1228 = vmatmul.mubr.bf16.gmra.mxu0 %v1193
    %v1229 = vpop.f32.mrf.mxu0
    %v1230 = vadd.f32 0.0, %v1229
    %v1231 = vpop.f32.mrf.mxu0
    %v1232 = vpop.f32.mrf.mxu0
    %v1233 = vadd.f32 0.0, %v1232
    %v1234 = vpop.f32.mrf.mxu0
    %1235 = vdwg.mxu0
    %v1237 = vsel %vm875, %v1056, 0
    %1239 = vmatprep.subr.bf16.mxu0 0
    %1240 = vmatpush1.bf16.msra.mxu0 0
    %1241 = vmatprep.subr.bf16.mxu0 0
    %1242 = vmatpush1.bf16.msra.mxu0 0
    %1243 = vmatprep.subr.bf16.mxu0 0
    %1244 = vmatpush1.bf16.msra.mxu0 0
    %1245 = vmatprep.subr.bf16.mxu0 0
    %1246 = vmatpush1.bf16.msra.mxu0 0
    %1247 = vmatprep.subr.bf16.mxu0 0
    %1248 = vmatpush1.bf16.msra.mxu0 0
    %1249 = vmatprep.subr.bf16.mxu0 0
    %1250 = vmatpush1.bf16.msra.mxu0 0
    %1251 = vmatprep.subr.bf16.mxu0 0
    %1252 = vmatpush1.bf16.msra.mxu0 0
    %1253 = vmatprep.subr.bf16.mxu0 0
    %1254 = vmatpush1.bf16.msra.mxu0 %v487
    %1255 = vmatprep.subr.bf16.mxu0 0
    %1256 = vmatpush2.bf16.msra.mxu0 0
    %1257 = vmatprep.subr.bf16.mxu0 0
    %1258 = vmatpush2.bf16.msra.mxu0 0
    %1259 = vmatprep.subr.bf16.mxu0 0
    %1260 = vmatpush2.bf16.msra.mxu0 0
    %1261 = vmatprep.subr.bf16.mxu0 0
    %1262 = vmatpush2.bf16.msra.mxu0 0
    %1263 = vmatprep.subr.bf16.mxu0 0
    %1264 = vmatpush2.bf16.msra.mxu0 0
    %1265 = vmatprep.subr.bf16.mxu0 0
    %1266 = vmatpush2.bf16.msra.mxu0 0
    %1267 = vmatprep.subr.bf16.mxu0 0
    %1268 = vmatpush2.bf16.msra.mxu0 0
    %1269 = vmatprep.subr.bf16.mxu0 0
    %1270 = vmatpush2.bf16.msra.mxu0 0
    %1271 = vmatprep.mubr.bf16.mxu0 0
    %1272 = vmatmul.mubr.bf16.gmra.mxu0 %v1237
    %v1273 = vpop.f32.mrf.mxu0
    %v1274 = vadd.f32 0.0, %v1273
    %v1275 = vpop.f32.mrf.mxu0
    %v1276 = vpop.f32.mrf.mxu0
    %v1277 = vadd.f32 0.0, %v1276
    %v1278 = vpop.f32.mrf.mxu0
    %1279 = vdwg.mxu0
    %v1281 = vsel %vm875, %v1057, 0
    %1283 = vmatprep.subr.bf16.mxu0 0
    %1284 = vmatpush1.bf16.msra.mxu0 0
    %1285 = vmatprep.subr.bf16.mxu0 0
    %1286 = vmatpush1.bf16.msra.mxu0 0
    %1287 = vmatprep.subr.bf16.mxu0 0
    %1288 = vmatpush1.bf16.msra.mxu0 0
    %1289 = vmatprep.subr.bf16.mxu0 0
    %1290 = vmatpush1.bf16.msra.mxu0 0
    %1291 = vmatprep.subr.bf16.mxu0 0
    %1292 = vmatpush1.bf16.msra.mxu0 0
    %1293 = vmatprep.subr.bf16.mxu0 0
    %1294 = vmatpush1.bf16.msra.mxu0 0
    %1295 = vmatprep.subr.bf16.mxu0 0
    %1296 = vmatpush1.bf16.msra.mxu0 0
    %1297 = vmatprep.subr.bf16.mxu0 0
    %1298 = vmatpush1.bf16.msra.mxu0 %v490
    %1299 = vmatprep.subr.bf16.mxu0 0
    %1300 = vmatpush2.bf16.msra.mxu0 0
    %1301 = vmatprep.subr.bf16.mxu0 0
    %1302 = vmatpush2.bf16.msra.mxu0 0
    %1303 = vmatprep.subr.bf16.mxu0 0
    %1304 = vmatpush2.bf16.msra.mxu0 0
    %1305 = vmatprep.subr.bf16.mxu0 0
    %1306 = vmatpush2.bf16.msra.mxu0 0
    %1307 = vmatprep.subr.bf16.mxu0 0
    %1308 = vmatpush2.bf16.msra.mxu0 0
    %1309 = vmatprep.subr.bf16.mxu0 0
    %1310 = vmatpush2.bf16.msra.mxu0 0
    %1311 = vmatprep.subr.bf16.mxu0 0
    %1312 = vmatpush2.bf16.msra.mxu0 0
    %1313 = vmatprep.subr.bf16.mxu0 0
    %1314 = vmatpush2.bf16.msra.mxu0 0
    %1315 = vmatprep.mubr.bf16.mxu0 0
    %1316 = vmatmul.mubr.bf16.gmra.mxu0 %v1281
    %v1317 = vpop.f32.mrf.mxu0
    %v1318 = vadd.f32 0.0, %v1317
    %v1319 = vpop.f32.mrf.mxu0
    %v1320 = vpop.f32.mrf.mxu0
    %v1321 = vadd.f32 0.0, %v1320
    %v1322 = vpop.f32.mrf.mxu0
    %1323 = vdwg.mxu0
    %v1325 = vsel %vm875, %v1058, 0
    %1327 = vmatprep.subr.bf16.mxu0 0
    %1328 = vmatpush1.bf16.msra.mxu0 0
    %1329 = vmatprep.subr.bf16.mxu0 0
    %1330 = vmatpush1.bf16.msra.mxu0 0
    %1331 = vmatprep.subr.bf16.mxu0 0
    %1332 = vmatpush1.bf16.msra.mxu0 0
    %1333 = vmatprep.subr.bf16.mxu0 0
    %1334 = vmatpush1.bf16.msra.mxu0 0
    %1335 = vmatprep.subr.bf16.mxu0 0
    %1336 = vmatpush1.bf16.msra.mxu0 0
    %1337 = vmatprep.subr.bf16.mxu0 0
    %1338 = vmatpush1.bf16.msra.mxu0 0
    %1339 = vmatprep.subr.bf16.mxu0 0
    %1340 = vmatpush1.bf16.msra.mxu0 0
    %1341 = vmatprep.subr.bf16.mxu0 0
    %1342 = vmatpush1.bf16.msra.mxu0 %v493
    %1343 = vmatprep.subr.bf16.mxu0 0
    %1344 = vmatpush2.bf16.msra.mxu0 0
    %1345 = vmatprep.subr.bf16.mxu0 0
    %1346 = vmatpush2.bf16.msra.mxu0 0
    %1347 = vmatprep.subr.bf16.mxu0 0
    %1348 = vmatpush2.bf16.msra.mxu0 0
    %1349 = vmatprep.subr.bf16.mxu0 0
    %1350 = vmatpush2.bf16.msra.mxu0 0
    %1351 = vmatprep.subr.bf16.mxu0 0
    %1352 = vmatpush2.bf16.msra.mxu0 0
    %1353 = vmatprep.subr.bf16.mxu0 0
    %1354 = vmatpush2.bf16.msra.mxu0 0
    %1355 = vmatprep.subr.bf16.mxu0 0
    %1356 = vmatpush2.bf16.msra.mxu0 0
    %1357 = vmatprep.subr.bf16.mxu0 0
    %1358 = vmatpush2.bf16.msra.mxu0 0
    %1359 = vmatprep.mubr.bf16.mxu0 0
    %1360 = vmatmul.mubr.bf16.gmra.mxu0 %v1325
    %v1361 = vpop.f32.mrf.mxu0
    %v1362 = vadd.f32 0.0, %v1361
    %v1363 = vpop.f32.mrf.mxu0
    %v1364 = vpop.f32.mrf.mxu0
    %v1365 = vadd.f32 0.0, %v1364
    %v1366 = vpop.f32.mrf.mxu0
    %1367 = vdwg.mxu0
    %v1369 = vsel %vm875, %v1059, 0
    %1371 = vmatprep.subr.bf16.mxu0 0
    %1372 = vmatpush1.bf16.msra.mxu0 0
    %1373 = vmatprep.subr.bf16.mxu0 0
    %1374 = vmatpush1.bf16.msra.mxu0 0
    %1375 = vmatprep.subr.bf16.mxu0 0
    %1376 = vmatpush1.bf16.msra.mxu0 0
    %1377 = vmatprep.subr.bf16.mxu0 0
    %1378 = vmatpush1.bf16.msra.mxu0 0
    %1379 = vmatprep.subr.bf16.mxu0 0
    %1380 = vmatpush1.bf16.msra.mxu0 0
    %1381 = vmatprep.subr.bf16.mxu0 0
    %1382 = vmatpush1.bf16.msra.mxu0 0
    %1383 = vmatprep.subr.bf16.mxu0 0
    %1384 = vmatpush1.bf16.msra.mxu0 0
    %1385 = vmatprep.subr.bf16.mxu0 0
    %1386 = vmatpush1.bf16.msra.mxu0 %v496
    %1387 = vmatprep.subr.bf16.mxu0 0
    %1388 = vmatpush2.bf16.msra.mxu0 0
    %1389 = vmatprep.subr.bf16.mxu0 0
    %1390 = vmatpush2.bf16.msra.mxu0 0
    %1391 = vmatprep.subr.bf16.mxu0 0
    %1392 = vmatpush2.bf16.msra.mxu0 0
    %1393 = vmatprep.subr.bf16.mxu0 0
    %1394 = vmatpush2.bf16.msra.mxu0 0
    %1395 = vmatprep.subr.bf16.mxu0 0
    %1396 = vmatpush2.bf16.msra.mxu0 0
    %1397 = vmatprep.subr.bf16.mxu0 0
    %1398 = vmatpush2.bf16.msra.mxu0 0
    %1399 = vmatprep.subr.bf16.mxu0 0
    %1400 = vmatpush2.bf16.msra.mxu0 0
    %1401 = vmatprep.subr.bf16.mxu0 0
    %1402 = vmatpush2.bf16.msra.mxu0 0
    %1403 = vmatprep.mubr.bf16.mxu0 0
    %1404 = vmatmul.mubr.bf16.gmra.mxu0 %v1369
    %v1405 = vpop.f32.mrf.mxu0
    %v1406 = vadd.f32 0.0, %v1405
    %v1407 = vpop.f32.mrf.mxu0
    %v1408 = vpop.f32.mrf.mxu0
    %v1409 = vadd.f32 0.0, %v1408
    %v1410 = vpop.f32.mrf.mxu0
    %1411 = vdwg.mxu0
    %v1412 = vld [vmem:[#allocation7] sm:$0xf]
    %v1413 = vld [vmem:[#allocation7 + $0x4] sm:$0xf]
    %v1414 = vld [vmem:[#allocation7 + $0x8] sm:$0xf]
    %v1415 = vld [vmem:[#allocation7 + $0xc] sm:$0xf]
    %v1416 = vld [vmem:[#allocation7 + $0x10] sm:$0xf]
    %v1417 = vld [vmem:[#allocation7 + $0x14] sm:$0xf]
    %v1418 = vld [vmem:[#allocation7 + $0x18] sm:$0xf]
    %v1419 = vld [vmem:[#allocation7 + $0x1c] sm:$0xf]
    %v1420 = vld [vmem:[#allocation7 + $0x20] sm:$0xf]
    %v1421 = vld [vmem:[#allocation7 + $0x24] sm:$0xf]
    %v1422 = vld [vmem:[#allocation7 + $0x28] sm:$0xf]
    %v1423 = vld [vmem:[#allocation7 + $0x2c] sm:$0xf]
    %v1424 = vld [vmem:[#allocation7 + $0x30] sm:$0xf]
    %v1425 = vld [vmem:[#allocation7 + $0x34] sm:$0xf]
    %v1426 = vld [vmem:[#allocation7 + $0x38] sm:$0xf]
    %v1427 = vld [vmem:[#allocation7 + $0x3c] sm:$0xf]
    %v1428 = vpack.c.bf16 %v1101, %v1098
    %v1429 = vpack.c.bf16 %v1145, %v1142
    %v1430 = vpack.c.bf16 %v1189, %v1186
    %v1431 = vpack.c.bf16 %v1233, %v1230
    %v1436 = vunpack.c.l.b16 %v1416
    %v1437 = vunpack.c.l.b16 %v1417
    %v1438 = vunpack.c.l.b16 %v1418
    %v1439 = vunpack.c.l.b16 %v1419
    %v1440 = vpack.c.b16 %v1437, %v1436
    %v1441 = vpack.c.b16 %v1439, %v1438
    %v1445 = vsel %vm498, %v1430, 0
    %v1448 = vsel %vm498, %v1431, 0
    %1450 = vmatprep.subr.bf16.mxu0 0
    %1451 = vmatpush1.bf16.msra.mxu0 0
    %1452 = vmatprep.subr.bf16.mxu0 0
    %1453 = vmatpush1.bf16.msra.mxu0 0
    %1454 = vmatprep.subr.bf16.mxu0 0
    %1455 = vmatpush1.bf16.msra.mxu0 0
    %1456 = vmatprep.subr.bf16.mxu0 0
    %1457 = vmatpush1.bf16.msra.mxu0 0
    %1458 = vmatprep.subr.bf16.mxu0 0
    %1459 = vmatpush1.bf16.msra.mxu0 0
    %1460 = vmatprep.subr.bf16.mxu0 0
    %1461 = vmatpush1.bf16.msra.mxu0 0
    %1462 = vmatprep.subr.bf16.mxu0 0
    %1463 = vmatpush1.bf16.msra.mxu0 %v1441
    %1464 = vmatprep.subr.bf16.mxu0 0
    %1465 = vmatpush1.bf16.msra.mxu0 %v1440
    %1466 = vmatprep.subr.bf16.mxu0 0
    %1467 = vmatpush2.bf16.msra.mxu0 0
    %1468 = vmatprep.subr.bf16.mxu0 0
    %1469 = vmatpush2.bf16.msra.mxu0 0
    %1470 = vmatprep.subr.bf16.mxu0 0
    %1471 = vmatpush2.bf16.msra.mxu0 0
    %1472 = vmatprep.subr.bf16.mxu0 0
    %1473 = vmatpush2.bf16.msra.mxu0 0
    %1474 = vmatprep.subr.bf16.mxu0 0
    %1475 = vmatpush2.bf16.msra.mxu0 0
    %1476 = vmatprep.subr.bf16.mxu0 0
    %1477 = vmatpush2.bf16.msra.mxu0 0
    %1478 = vmatprep.subr.bf16.mxu0 0
    %1479 = vmatpush2.bf16.msra.mxu0 0
    %1480 = vmatprep.subr.bf16.mxu0 0
    %1481 = vmatpush2.bf16.msra.mxu0 0
    %1482 = vmatprep.mubr.bf16.mxu0 0
    %1483 = vmatmul.mubr.bf16.gmra.mxu0 %v1445
    %v1484 = vpop.f32.mrf.mxu0
    %v1485 = vadd.f32 0.0, %v1484
    %v1486 = vpop.f32.mrf.mxu0
    %v1487 = vpop.f32.mrf.mxu0
    %v1488 = vadd.f32 0.0, %v1487
    %v1489 = vpop.f32.mrf.mxu0
    %1490 = vmatprep.mubr.bf16.mxu0 0
    %1491 = vmatmul.mubr.bf16.gmra.mxu0 %v1448
    %v1492 = vpop.f32.mrf.mxu0
    %v1493 = vadd.f32 0.0, %v1492
    %v1494 = vpop.f32.mrf.mxu0
    %v1495 = vpop.f32.mrf.mxu0
    %v1496 = vadd.f32 0.0, %v1495
    %v1497 = vpop.f32.mrf.mxu0
    %1498 = vdwg.mxu0
    %v1503 = vunpack.c.l.b16 %v1412
    %v1504 = vunpack.c.l.b16 %v1413
    %v1505 = vunpack.c.l.b16 %v1414
    %v1506 = vunpack.c.l.b16 %v1415
    %v1507 = vpack.c.b16 %v1504, %v1503
    %v1508 = vpack.c.b16 %v1506, %v1505
    %v1512 = vsel %vm498, %v1428, 0
    %v1515 = vsel %vm498, %v1429, 0
    %1517 = vmatprep.subr.bf16.mxu0 0
    %1518 = vmatpush1.bf16.msra.mxu0 0
    %1519 = vmatprep.subr.bf16.mxu0 0
    %1520 = vmatpush1.bf16.msra.mxu0 0
    %1521 = vmatprep.subr.bf16.mxu0 0
    %1522 = vmatpush1.bf16.msra.mxu0 0
    %1523 = vmatprep.subr.bf16.mxu0 0
    %1524 = vmatpush1.bf16.msra.mxu0 0
    %1525 = vmatprep.subr.bf16.mxu0 0
    %1526 = vmatpush1.bf16.msra.mxu0 0
    %1527 = vmatprep.subr.bf16.mxu0 0
    %1528 = vmatpush1.bf16.msra.mxu0 0
    %1529 = vmatprep.subr.bf16.mxu0 0
    %1530 = vmatpush1.bf16.msra.mxu0 %v1508
    %1531 = vmatprep.subr.bf16.mxu0 0
    %1532 = vmatpush1.bf16.msra.mxu0 %v1507
    %1533 = vmatprep.subr.bf16.mxu0 0
    %1534 = vmatpush2.bf16.msra.mxu0 0
    %1535 = vmatprep.subr.bf16.mxu0 0
    %1536 = vmatpush2.bf16.msra.mxu0 0
    %1537 = vmatprep.subr.bf16.mxu0 0
    %1538 = vmatpush2.bf16.msra.mxu0 0
    %1539 = vmatprep.subr.bf16.mxu0 0
    %1540 = vmatpush2.bf16.msra.mxu0 0
    %1541 = vmatprep.subr.bf16.mxu0 0
    %1542 = vmatpush2.bf16.msra.mxu0 0
    %1543 = vmatprep.subr.bf16.mxu0 0
    %1544 = vmatpush2.bf16.msra.mxu0 0
    %1545 = vmatprep.subr.bf16.mxu0 0
    %1546 = vmatpush2.bf16.msra.mxu0 0
    %1547 = vmatprep.subr.bf16.mxu0 0
    %1548 = vmatpush2.bf16.msra.mxu0 0
    %1549 = vmatprep.mubr.bf16.mxu0 0
    %1550 = vmatmul.mubr.bf16.gmra.mxu0 %v1512
    %v1551 = vpop.f32.mrf.mxu0
    %v1552 = vadd.f32 %v1485, %v1551
    %v1553 = vpop.f32.mrf.mxu0
    %v1554 = vpop.f32.mrf.mxu0
    %v1555 = vadd.f32 %v1488, %v1554
    %v1556 = vpop.f32.mrf.mxu0
    %1557 = vmatprep.mubr.bf16.mxu0 0
    %1558 = vmatmul.mubr.bf16.gmra.mxu0 %v1515
    %v1559 = vpop.f32.mrf.mxu0
    %v1560 = vadd.f32 %v1493, %v1559
    %v1561 = vpop.f32.mrf.mxu0
    %v1562 = vpop.f32.mrf.mxu0
    %v1563 = vadd.f32 %v1496, %v1562
    %v1564 = vpop.f32.mrf.mxu0
    %1565 = vdwg.mxu0
    %v1566 = vpack.c.bf16 %v1277, %v1274
    %v1567 = vpack.c.bf16 %v1321, %v1318
    %v1572 = vunpack.c.l.b16 %v1420
    %v1573 = vunpack.c.l.b16 %v1421
    %v1574 = vunpack.c.l.b16 %v1422
    %v1575 = vunpack.c.l.b16 %v1423
    %v1576 = vpack.c.b16 %v1573, %v1572
    %v1577 = vpack.c.b16 %v1575, %v1574
    %v1581 = vsel %vm498, %v1566, 0
    %v1584 = vsel %vm498, %v1567, 0
    %1586 = vmatprep.subr.bf16.mxu0 0
    %1587 = vmatpush1.bf16.msra.mxu0 0
    %1588 = vmatprep.subr.bf16.mxu0 0
    %1589 = vmatpush1.bf16.msra.mxu0 0
    %1590 = vmatprep.subr.bf16.mxu0 0
    %1591 = vmatpush1.bf16.msra.mxu0 0
    %1592 = vmatprep.subr.bf16.mxu0 0
    %1593 = vmatpush1.bf16.msra.mxu0 0
    %1594 = vmatprep.subr.bf16.mxu0 0
    %1595 = vmatpush1.bf16.msra.mxu0 0
    %1596 = vmatprep.subr.bf16.mxu0 0
    %1597 = vmatpush1.bf16.msra.mxu0 0
    %1598 = vmatprep.subr.bf16.mxu0 0
    %1599 = vmatpush1.bf16.msra.mxu0 %v1577
    %1600 = vmatprep.subr.bf16.mxu0 0
    %1601 = vmatpush1.bf16.msra.mxu0 %v1576
    %1602 = vmatprep.subr.bf16.mxu0 0
    %1603 = vmatpush2.bf16.msra.mxu0 0
    %1604 = vmatprep.subr.bf16.mxu0 0
    %1605 = vmatpush2.bf16.msra.mxu0 0
    %1606 = vmatprep.subr.bf16.mxu0 0
    %1607 = vmatpush2.bf16.msra.mxu0 0
    %1608 = vmatprep.subr.bf16.mxu0 0
    %1609 = vmatpush2.bf16.msra.mxu0 0
    %1610 = vmatprep.subr.bf16.mxu0 0
    %1611 = vmatpush2.bf16.msra.mxu0 0
    %1612 = vmatprep.subr.bf16.mxu0 0
    %1613 = vmatpush2.bf16.msra.mxu0 0
    %1614 = vmatprep.subr.bf16.mxu0 0
    %1615 = vmatpush2.bf16.msra.mxu0 0
    %1616 = vmatprep.subr.bf16.mxu0 0
    %1617 = vmatpush2.bf16.msra.mxu0 0
    %1618 = vmatprep.mubr.bf16.mxu0 0
    %1619 = vmatmul.mubr.bf16.gmra.mxu0 %v1581
    %v1620 = vpop.f32.mrf.mxu0
    %v1621 = vadd.f32 0.0, %v1620
    %v1622 = vpop.f32.mrf.mxu0
    %v1623 = vpop.f32.mrf.mxu0
    %v1624 = vadd.f32 0.0, %v1623
    %v1625 = vpop.f32.mrf.mxu0
    %1626 = vmatprep.mubr.bf16.mxu0 0
    %1627 = vmatmul.mubr.bf16.gmra.mxu0 %v1584
    %v1628 = vpop.f32.mrf.mxu0
    %v1629 = vadd.f32 0.0, %v1628
    %v1630 = vpop.f32.mrf.mxu0
    %v1631 = vpop.f32.mrf.mxu0
    %v1632 = vadd.f32 0.0, %v1631
    %v1633 = vpop.f32.mrf.mxu0
    %1634 = vdwg.mxu0
    %v1635 = vadd.f32 %v1552, %v1621
    %v1636 = vadd.f32 %v1555, %v1624
    %v1637 = vadd.f32 %v1560, %v1629
    %v1638 = vadd.f32 %v1563, %v1632
    %v1639 = vpack.c.bf16 %v1365, %v1362
    %v1640 = vpack.c.bf16 %v1409, %v1406
    %v1645 = vunpack.c.l.b16 %v1424
    %v1646 = vunpack.c.l.b16 %v1425
    %v1647 = vunpack.c.l.b16 %v1426
    %v1648 = vunpack.c.l.b16 %v1427
    %v1649 = vpack.c.b16 %v1646, %v1645
    %v1650 = vpack.c.b16 %v1648, %v1647
    %v1654 = vsel %vm498, %v1639, 0
    %v1657 = vsel %vm498, %v1640, 0
    %1659 = vmatprep.subr.bf16.mxu0 0
    %1660 = vmatpush1.bf16.msra.mxu0 0
    %1661 = vmatprep.subr.bf16.mxu0 0
    %1662 = vmatpush1.bf16.msra.mxu0 0
    %1663 = vmatprep.subr.bf16.mxu0 0
    %1664 = vmatpush1.bf16.msra.mxu0 0
    %1665 = vmatprep.subr.bf16.mxu0 0
    %1666 = vmatpush1.bf16.msra.mxu0 0
    %1667 = vmatprep.subr.bf16.mxu0 0
    %1668 = vmatpush1.bf16.msra.mxu0 0
    %1669 = vmatprep.subr.bf16.mxu0 0
    %1670 = vmatpush1.bf16.msra.mxu0 0
    %1671 = vmatprep.subr.bf16.mxu0 0
    %1672 = vmatpush1.bf16.msra.mxu0 %v1650
    %1673 = vmatprep.subr.bf16.mxu0 0
    %1674 = vmatpush1.bf16.msra.mxu0 %v1649
    %1675 = vmatprep.subr.bf16.mxu0 0
    %1676 = vmatpush2.bf16.msra.mxu0 0
    %1677 = vmatprep.subr.bf16.mxu0 0
    %1678 = vmatpush2.bf16.msra.mxu0 0
    %1679 = vmatprep.subr.bf16.mxu0 0
    %1680 = vmatpush2.bf16.msra.mxu0 0
    %1681 = vmatprep.subr.bf16.mxu0 0
    %1682 = vmatpush2.bf16.msra.mxu0 0
    %1683 = vmatprep.subr.bf16.mxu0 0
    %1684 = vmatpush2.bf16.msra.mxu0 0
    %1685 = vmatprep.subr.bf16.mxu0 0
    %1686 = vmatpush2.bf16.msra.mxu0 0
    %1687 = vmatprep.subr.bf16.mxu0 0
    %1688 = vmatpush2.bf16.msra.mxu0 0
    %1689 = vmatprep.subr.bf16.mxu0 0
    %1690 = vmatpush2.bf16.msra.mxu0 0
    %1691 = vmatprep.mubr.bf16.mxu0 0
    %1692 = vmatmul.mubr.bf16.gmra.mxu0 %v1654
    %v1693 = vpop.f32.mrf.mxu0
    %v1694 = vadd.f32 0.0, %v1693
    %v1695 = vpop.f32.mrf.mxu0
    %v1696 = vpop.f32.mrf.mxu0
    %v1697 = vadd.f32 0.0, %v1696
    %v1698 = vpop.f32.mrf.mxu0
    %1699 = vmatprep.mubr.bf16.mxu0 0
    %1700 = vmatmul.mubr.bf16.gmra.mxu0 %v1657
    %v1701 = vpop.f32.mrf.mxu0
    %v1702 = vadd.f32 0.0, %v1701
    %v1703 = vpop.f32.mrf.mxu0
    %v1704 = vpop.f32.mrf.mxu0
    %v1705 = vadd.f32 0.0, %v1704
    %v1706 = vpop.f32.mrf.mxu0
    %1707 = vdwg.mxu0
    %v1708 = vadd.f32 %v1635, %v1694
    %v1709 = vadd.f32 %v1636, %v1697
    %v1710 = vadd.f32 %v1637, %v1702
    %v1711 = vadd.f32 %v1638, %v1705
    %v1712 = vld [vmem:[%s4] sm:$0x1]
    %v1714 = vlaneseq
    %v1715 = vshrl.u32 %v1714, 7
    %v1716 = vsub.s32 0, %v1715
    %v1717 = vrot.slane %v1712, %v1716
    %v1719 = vadd.f32 %v1708, %v1717
    %v1720 = vadd.f32 %v1709, %v1717
    %v1721 = vadd.f32 %v1710, %v1717
    %v1722 = vadd.f32 %v1711, %v1717
    %v1723 = vadd.f32 %v114, %v1719
    %v1724 = vadd.f32 %v115, %v1720
    %v1725 = vadd.f32 %v116, %v1721
    %v1726 = vadd.f32 %v117, %v1722
    %1727 = vadd.xlane.f32.xlu0 %v1723
    %v1728 = vpop.xlane.xlu0 %1727
    %1729 = vadd.xlane.f32.xlu0 %v1724
    %v1730 = vpop.xlane.xlu0 %1729
    %1731 = vadd.xlane.f32.xlu0 %v1725
    %v1732 = vpop.xlane.xlu0 %1731
    %1733 = vadd.xlane.f32.xlu0 %v1726
    %v1734 = vpop.xlane.xlu0 %1733
    %v1735 = vmul.f32 %v1728, %v126
    %v1736 = vmul.f32 %v1730, %v126
    %v1737 = vmul.f32 %v1732, %v126
    %v1738 = vmul.f32 %v1734, %v126
    %v1739 = vsub.f32 %v1723, %v1735
    %v1740 = vsub.f32 %v1724, %v1736
    %v1741 = vsub.f32 %v1725, %v1737
    %v1742 = vsub.f32 %v1726, %v1738
    %v1743 = vmul.f32 %v1739, %v1739
    %v1744 = vmul.f32 %v1740, %v1740
    %v1745 = vmul.f32 %v1741, %v1741
    %v1746 = vmul.f32 %v1742, %v1742
    %1747 = vadd.xlane.f32.xlu0 %v1743
    %v1748 = vpop.xlane.xlu0 %1747
    %1749 = vadd.xlane.f32.xlu0 %v1744
    %v1750 = vpop.xlane.xlu0 %1749
    %1751 = vadd.xlane.f32.xlu0 %v1745
    %v1752 = vpop.xlane.xlu0 %1751
    %1753 = vadd.xlane.f32.xlu0 %v1746
    %v1754 = vpop.xlane.xlu0 %1753
    %v1755 = vmul.f32 %v1748, %v126
    %v1756 = vmul.f32 %v1750, %v126
    %v1757 = vmul.f32 %v1752, %v126
    %v1758 = vmul.f32 %v1754, %v126
    %v1759 = vadd.f32 %v1755, 1e-05
    %v1760 = vadd.f32 %v1756, 1e-05
    %v1761 = vadd.f32 %v1757, 1e-05
    %v1762 = vadd.f32 %v1758, 1e-05
    %v1763 = vrsqrt.pop %v1759
    %v1764 = vrsqrt.pop %v1760
    %v1765 = vrsqrt.pop %v1761
    %v1766 = vrsqrt.pop %v1762
    %v1767 = vmul.f32 %v1739, %v1763
    %v1768 = vmul.f32 %v1740, %v1764
    %v1769 = vmul.f32 %v1741, %v1765
    %v1770 = vmul.f32 %v1742, %v1766
    %v1771 = vpack.c.bf16 %v1768, %v1767
    %v1772 = vpack.c.bf16 %v1770, %v1769
    %v1773 = vld [vmem:[#allocation8] sm:$0xff]
    %v1774 = vld [vmem:[#allocation8 + $0x8] sm:$0xff]
    %v1775 = vld [vmem:[#allocation8 + $0x10] sm:$0xff]
    %v1776 = vld [vmem:[#allocation8 + $0x18] sm:$0xff]
    %v1777 = vld [vmem:[#allocation8 + $0x20] sm:$0xff]
    %v1778 = vld [vmem:[#allocation8 + $0x28] sm:$0xff]
    %v1779 = vld [vmem:[#allocation8 + $0x30] sm:$0xff]
    %v1780 = vld [vmem:[#allocation8 + $0x38] sm:$0xff]
    %v1781 = vld [vmem:[#allocation8 + $0x40] sm:$0xff]
    %v1782 = vld [vmem:[#allocation8 + $0x48] sm:$0xff]
    %v1783 = vld [vmem:[#allocation8 + $0x50] sm:$0xff]
    %v1784 = vld [vmem:[#allocation8 + $0x58] sm:$0xff]
    %v1785 = vld [vmem:[#allocation8 + $0x60] sm:$0xff]
    %v1786 = vld [vmem:[#allocation8 + $0x68] sm:$0xff]
    %v1787 = vld [vmem:[#allocation8 + $0x70] sm:$0xff]
    %v1788 = vld [vmem:[#allocation8 + $0x78] sm:$0xff]
    %v1789 = vld [vmem:[#allocation8 + $0x80] sm:$0xff]
    %v1790 = vld [vmem:[#allocation8 + $0x88] sm:$0xff]
    %v1791 = vld [vmem:[#allocation8 + $0x90] sm:$0xff]
    %v1792 = vld [vmem:[#allocation8 + $0x98] sm:$0xff]
    %v1793 = vld [vmem:[#allocation8 + $0xa0] sm:$0xff]
    %v1794 = vld [vmem:[#allocation8 + $0xa8] sm:$0xff]
    %v1795 = vld [vmem:[#allocation8 + $0xb0] sm:$0xff]
    %v1796 = vld [vmem:[#allocation8 + $0xb8] sm:$0xff]
    %v1797 = vld [vmem:[#allocation8 + $0xc0] sm:$0xff]
    %v1798 = vld [vmem:[#allocation8 + $0xc8] sm:$0xff]
    %v1799 = vld [vmem:[#allocation8 + $0xd0] sm:$0xff]
    %v1800 = vld [vmem:[#allocation8 + $0xd8] sm:$0xff]
    %v1801 = vld [vmem:[#allocation8 + $0xe0] sm:$0xff]
    %v1802 = vld [vmem:[#allocation8 + $0xe8] sm:$0xff]
    %v1803 = vld [vmem:[#allocation8 + $0xf0] sm:$0xff]
    %v1804 = vld [vmem:[#allocation8 + $0xf8] sm:$0xff]
    %v1805 = vld [vmem:[#allocation10] sm:$0xf]
    %v1807 = vlaneseq
    %v1808 = vshrl.u32 %v1807, 7
    %v1809 = vsub.s32 0, %v1808
    %v1810 = vrot.slane %v1805, %v1809
    %v1811 = vlaneseq
    %v1812 = vshrl.u32 %v1811, 7
    %v1813 = vsub.s32 1, %v1812
    %v1814 = vrot.slane %v1805, %v1813
    %v1815 = vlaneseq
    %v1816 = vshrl.u32 %v1815, 7
    %v1817 = vsub.s32 2, %v1816
    %v1818 = vrot.slane %v1805, %v1817
    %v1819 = vlaneseq
    %v1820 = vshrl.u32 %v1819, 7
    %v1821 = vsub.s32 3, %v1820
    %v1822 = vrot.slane %v1805, %v1821
    %v1859 = vunpack.c.l.b16 %v1773
    %v1860 = vunpack.c.h.b16 %v1773
    %v1861 = vunpack.c.l.b16 %v1774
    %v1862 = vunpack.c.h.b16 %v1774
    %v1863 = vunpack.c.l.b16 %v1775
    %v1864 = vunpack.c.h.b16 %v1775
    %v1865 = vunpack.c.l.b16 %v1776
    %v1866 = vunpack.c.h.b16 %v1776
    %v1867 = vunpack.c.l.b16 %v1777
    %v1868 = vunpack.c.h.b16 %v1777
    %v1869 = vunpack.c.l.b16 %v1778
    %v1870 = vunpack.c.h.b16 %v1778
    %v1871 = vunpack.c.l.b16 %v1779
    %v1872 = vunpack.c.h.b16 %v1779
    %v1873 = vunpack.c.l.b16 %v1780
    %v1874 = vunpack.c.h.b16 %v1780
    %v1875 = vunpack.c.l.b16 %v1781
    %v1876 = vunpack.c.h.b16 %v1781
    %v1877 = vunpack.c.l.b16 %v1782
    %v1878 = vunpack.c.h.b16 %v1782
    %v1879 = vunpack.c.l.b16 %v1783
    %v1880 = vunpack.c.h.b16 %v1783
    %v1881 = vunpack.c.l.b16 %v1784
    %v1882 = vunpack.c.h.b16 %v1784
    %v1883 = vunpack.c.l.b16 %v1785
    %v1884 = vunpack.c.h.b16 %v1785
    %v1885 = vunpack.c.l.b16 %v1786
    %v1886 = vunpack.c.h.b16 %v1786
    %v1887 = vunpack.c.l.b16 %v1787
    %v1888 = vunpack.c.h.b16 %v1787
    %v1889 = vunpack.c.l.b16 %v1788
    %v1890 = vunpack.c.h.b16 %v1788
    %v1891 = vunpack.c.l.b16 %v1789
    %v1892 = vunpack.c.h.b16 %v1789
    %v1893 = vunpack.c.l.b16 %v1790
    %v1894 = vunpack.c.h.b16 %v1790
    %v1895 = vunpack.c.l.b16 %v1791
    %v1896 = vunpack.c.h.b16 %v1791
    %v1897 = vunpack.c.l.b16 %v1792
    %v1898 = vunpack.c.h.b16 %v1792
    %v1899 = vunpack.c.l.b16 %v1793
    %v1900 = vunpack.c.h.b16 %v1793
    %v1901 = vunpack.c.l.b16 %v1794
    %v1902 = vunpack.c.h.b16 %v1794
    %v1903 = vunpack.c.l.b16 %v1795
    %v1904 = vunpack.c.h.b16 %v1795
    %v1905 = vunpack.c.l.b16 %v1796
    %v1906 = vunpack.c.h.b16 %v1796
    %v1907 = vunpack.c.l.b16 %v1797
    %v1908 = vunpack.c.h.b16 %v1797
    %v1909 = vunpack.c.l.b16 %v1798
    %v1910 = vunpack.c.h.b16 %v1798
    %v1911 = vunpack.c.l.b16 %v1799
    %v1912 = vunpack.c.h.b16 %v1799
    %v1913 = vunpack.c.l.b16 %v1800
    %v1914 = vunpack.c.h.b16 %v1800
    %v1915 = vunpack.c.l.b16 %v1801
    %v1916 = vunpack.c.h.b16 %v1801
    %v1917 = vunpack.c.l.b16 %v1802
    %v1918 = vunpack.c.h.b16 %v1802
    %v1919 = vunpack.c.l.b16 %v1803
    %v1920 = vunpack.c.h.b16 %v1803
    %v1921 = vunpack.c.l.b16 %v1804
    %v1922 = vunpack.c.h.b16 %v1804
    %v1923 = vpack.c.b16 %v1863, %v1859
    %v1924 = vpack.c.b16 %v1864, %v1860
    %v1925 = vpack.c.b16 %v1865, %v1861
    %v1926 = vpack.c.b16 %v1866, %v1862
    %v1927 = vpack.c.b16 %v1871, %v1867
    %v1928 = vpack.c.b16 %v1872, %v1868
    %v1929 = vpack.c.b16 %v1873, %v1869
    %v1930 = vpack.c.b16 %v1874, %v1870
    %v1931 = vpack.c.b16 %v1879, %v1875
    %v1932 = vpack.c.b16 %v1880, %v1876
    %v1933 = vpack.c.b16 %v1881, %v1877
    %v1934 = vpack.c.b16 %v1882, %v1878
    %v1935 = vpack.c.b16 %v1887, %v1883
    %v1936 = vpack.c.b16 %v1888, %v1884
    %v1937 = vpack.c.b16 %v1889, %v1885
    %v1938 = vpack.c.b16 %v1890, %v1886
    %v1939 = vpack.c.b16 %v1895, %v1891
    %v1940 = vpack.c.b16 %v1896, %v1892
    %v1941 = vpack.c.b16 %v1897, %v1893
    %v1942 = vpack.c.b16 %v1898, %v1894
    %v1943 = vpack.c.b16 %v1903, %v1899
    %v1944 = vpack.c.b16 %v1904, %v1900
    %v1945 = vpack.c.b16 %v1905, %v1901
    %v1946 = vpack.c.b16 %v1906, %v1902
    %v1947 = vpack.c.b16 %v1911, %v1907
    %v1948 = vpack.c.b16 %v1912, %v1908
    %v1949 = vpack.c.b16 %v1913, %v1909
    %v1950 = vpack.c.b16 %v1914, %v1910
    %v1951 = vpack.c.b16 %v1919, %v1915
    %v1952 = vpack.c.b16 %v1920, %v1916
    %v1953 = vpack.c.b16 %v1921, %v1917
    %v1954 = vpack.c.b16 %v1922, %v1918
    %1987 = vmatprep.subr.bf16.mxu0 %v1952
    %1988 = vmatpush1.bf16.msra.mxu0 %v1951
    %1989 = vmatprep.subr.bf16.mxu0 %v1948
    %1990 = vmatpush1.bf16.msra.mxu0 %v1947
    %1991 = vmatprep.subr.bf16.mxu0 %v1944
    %1992 = vmatpush1.bf16.msra.mxu0 %v1943
    %1993 = vmatprep.subr.bf16.mxu0 %v1940
    %1994 = vmatpush1.bf16.msra.mxu0 %v1939
    %1995 = vmatprep.subr.bf16.mxu0 %v1936
    %1996 = vmatpush1.bf16.msra.mxu0 %v1935
    %1997 = vmatprep.subr.bf16.mxu0 %v1932
    %1998 = vmatpush1.bf16.msra.mxu0 %v1931
    %1999 = vmatprep.subr.bf16.mxu0 %v1928
    %2000 = vmatpush1.bf16.msra.mxu0 %v1927
    %2001 = vmatprep.subr.bf16.mxu0 %v1924
    %2002 = vmatpush1.bf16.msra.mxu0 %v1923
    %2003 = vmatprep.subr.bf16.mxu0 0
    %2004 = vmatpush2.bf16.msra.mxu0 0
    %2005 = vmatprep.subr.bf16.mxu0 0
    %2006 = vmatpush2.bf16.msra.mxu0 0
    %2007 = vmatprep.subr.bf16.mxu0 0
    %2008 = vmatpush2.bf16.msra.mxu0 0
    %2009 = vmatprep.subr.bf16.mxu0 0
    %2010 = vmatpush2.bf16.msra.mxu0 0
    %2011 = vmatprep.subr.bf16.mxu0 0
    %2012 = vmatpush2.bf16.msra.mxu0 0
    %2013 = vmatprep.subr.bf16.mxu0 0
    %2014 = vmatpush2.bf16.msra.mxu0 0
    %2015 = vmatprep.subr.bf16.mxu0 0
    %2016 = vmatpush2.bf16.msra.mxu0 0
    %2017 = vmatprep.subr.bf16.mxu0 0
    %2018 = vmatpush2.bf16.msra.mxu0 0
    %2019 = vmatprep.mubr.bf16.mxu0 0
    %2020 = vmatmul.mubr.bf16.gmra.mxu0 %v1771
    %v2021 = vpop.f32.mrf.mxu0
    %v2022 = vadd.f32 %v1810, %v2021
    %v2023 = vpop.f32.mrf.mxu0
    %v2024 = vadd.f32 %v1814, %v2023
    %v2025 = vpop.f32.mrf.mxu0
    %v2026 = vadd.f32 %v1810, %v2025
    %v2027 = vpop.f32.mrf.mxu0
    %v2028 = vadd.f32 %v1814, %v2027
    %2029 = vmatprep.mubr.bf16.mxu0 0
    %2030 = vmatmul.mubr.bf16.gmra.mxu0 %v1772
    %v2031 = vpop.f32.mrf.mxu0
    %v2032 = vadd.f32 %v1810, %v2031
    %v2033 = vpop.f32.mrf.mxu0
    %v2034 = vadd.f32 %v1814, %v2033
    %v2035 = vpop.f32.mrf.mxu0
    %v2036 = vadd.f32 %v1810, %v2035
    %v2037 = vpop.f32.mrf.mxu0
    %v2038 = vadd.f32 %v1814, %v2037
    %2039 = vdwg.mxu0
    %2040 = vmatprep.subr.bf16.mxu0 %v1954
    %2041 = vmatpush1.bf16.msra.mxu0 %v1953
    %2042 = vmatprep.subr.bf16.mxu0 %v1950
    %2043 = vmatpush1.bf16.msra.mxu0 %v1949
    %2044 = vmatprep.subr.bf16.mxu0 %v1946
    %2045 = vmatpush1.bf16.msra.mxu0 %v1945
    %2046 = vmatprep.subr.bf16.mxu0 %v1942
    %2047 = vmatpush1.bf16.msra.mxu0 %v1941
    %2048 = vmatprep.subr.bf16.mxu0 %v1938
    %2049 = vmatpush1.bf16.msra.mxu0 %v1937
    %2050 = vmatprep.subr.bf16.mxu0 %v1934
    %2051 = vmatpush1.bf16.msra.mxu0 %v1933
    %2052 = vmatprep.subr.bf16.mxu0 %v1930
    %2053 = vmatpush1.bf16.msra.mxu0 %v1929
    %2054 = vmatprep.subr.bf16.mxu0 %v1926
    %2055 = vmatpush1.bf16.msra.mxu0 %v1925
    %2056 = vmatprep.subr.bf16.mxu0 0
    %2057 = vmatpush2.bf16.msra.mxu0 0
    %2058 = vmatprep.subr.bf16.mxu0 0
    %2059 = vmatpush2.bf16.msra.mxu0 0
    %2060 = vmatprep.subr.bf16.mxu0 0
    %2061 = vmatpush2.bf16.msra.mxu0 0
    %2062 = vmatprep.subr.bf16.mxu0 0
    %2063 = vmatpush2.bf16.msra.mxu0 0
    %2064 = vmatprep.subr.bf16.mxu0 0
    %2065 = vmatpush2.bf16.msra.mxu0 0
    %2066 = vmatprep.subr.bf16.mxu0 0
    %2067 = vmatpush2.bf16.msra.mxu0 0
    %2068 = vmatprep.subr.bf16.mxu0 0
    %2069 = vmatpush2.bf16.msra.mxu0 0
    %2070 = vmatprep.subr.bf16.mxu0 0
    %2071 = vmatpush2.bf16.msra.mxu0 0
    %2072 = vmatprep.mubr.bf16.mxu0 0
    %2073 = vmatmul.mubr.bf16.gmra.mxu0 %v1771
    %v2074 = vpop.f32.mrf.mxu0
    %v2075 = vadd.f32 %v1818, %v2074
    %v2076 = vpop.f32.mrf.mxu0
    %v2077 = vadd.f32 %v1822, %v2076
    %v2078 = vpop.f32.mrf.mxu0
    %v2079 = vadd.f32 %v1818, %v2078
    %v2080 = vpop.f32.mrf.mxu0
    %v2081 = vadd.f32 %v1822, %v2080
    %2082 = vmatprep.mubr.bf16.mxu0 0
    %2083 = vmatmul.mubr.bf16.gmra.mxu0 %v1772
    %v2084 = vpop.f32.mrf.mxu0
    %v2085 = vadd.f32 %v1818, %v2084
    %v2086 = vpop.f32.mrf.mxu0
    %v2087 = vadd.f32 %v1822, %v2086
    %v2088 = vpop.f32.mrf.mxu0
    %v2089 = vadd.f32 %v1818, %v2088
    %v2090 = vpop.f32.mrf.mxu0
    %v2091 = vadd.f32 %v1822, %v2090
    %2092 = vdwg.mxu0
    %v2093 = vmul.f32 %v2022, 1.702
    %v2094 = vmul.f32 %v2024, 1.702
    %v2095 = vmul.f32 %v2075, 1.702
    %v2096 = vmul.f32 %v2077, 1.702
    %v2097 = vmul.f32 %v2026, 1.702
    %v2098 = vmul.f32 %v2028, 1.702
    %v2099 = vmul.f32 %v2079, 1.702
    %v2100 = vmul.f32 %v2081, 1.702
    %v2101 = vmul.f32 %v2032, 1.702
    %v2102 = vmul.f32 %v2034, 1.702
    %v2103 = vmul.f32 %v2085, 1.702
    %v2104 = vmul.f32 %v2087, 1.702
    %v2105 = vmul.f32 %v2036, 1.702
    %v2106 = vmul.f32 %v2038, 1.702
    %v2107 = vmul.f32 %v2089, 1.702
    %v2108 = vmul.f32 %v2091, 1.702
    %v2109 = vxor.u32 %v2093, 2147483648
    %v2110 = vxor.u32 %v2094, 2147483648
    %v2111 = vxor.u32 %v2095, 2147483648
    %v2112 = vxor.u32 %v2096, 2147483648
    %v2113 = vxor.u32 %v2097, 2147483648
    %v2114 = vxor.u32 %v2098, 2147483648
    %v2115 = vxor.u32 %v2099, 2147483648
    %v2116 = vxor.u32 %v2100, 2147483648
    %v2117 = vxor.u32 %v2101, 2147483648
    %v2118 = vxor.u32 %v2102, 2147483648
    %v2119 = vxor.u32 %v2103, 2147483648
    %v2120 = vxor.u32 %v2104, 2147483648
    %v2121 = vxor.u32 %v2105, 2147483648
    %v2122 = vxor.u32 %v2106, 2147483648
    %v2123 = vxor.u32 %v2107, 2147483648
    %v2124 = vxor.u32 %v2108, 2147483648
    %v2125 = vmul.f32 %v2109, 1.442695
    %v2126 = vpow.pop %v2125
    %v2127 = vmul.f32 %v2110, 1.442695
    %v2128 = vpow.pop %v2127
    %v2129 = vmul.f32 %v2111, 1.442695
    %v2130 = vpow.pop %v2129
    %v2131 = vmul.f32 %v2112, 1.442695
    %v2132 = vpow.pop %v2131
    %v2133 = vmul.f32 %v2113, 1.442695
    %v2134 = vpow.pop %v2133
    %v2135 = vmul.f32 %v2114, 1.442695
    %v2136 = vpow.pop %v2135
    %v2137 = vmul.f32 %v2115, 1.442695
    %v2138 = vpow.pop %v2137
    %v2139 = vmul.f32 %v2116, 1.442695
    %v2140 = vpow.pop %v2139
    %v2141 = vmul.f32 %v2117, 1.442695
    %v2142 = vpow.pop %v2141
    %v2143 = vmul.f32 %v2118, 1.442695
    %v2144 = vpow.pop %v2143
    %v2145 = vmul.f32 %v2119, 1.442695
    %v2146 = vpow.pop %v2145
    %v2147 = vmul.f32 %v2120, 1.442695
    %v2148 = vpow.pop %v2147
    %v2149 = vmul.f32 %v2121, 1.442695
    %v2150 = vpow.pop %v2149
    %v2151 = vmul.f32 %v2122, 1.442695
    %v2152 = vpow.pop %v2151
    %v2153 = vmul.f32 %v2123, 1.442695
    %v2154 = vpow.pop %v2153
    %v2155 = vmul.f32 %v2124, 1.442695
    %v2156 = vpow.pop %v2155
    %v2157 = vadd.f32 %v2126, 1.0
    %v2158 = vadd.f32 %v2128, 1.0
    %v2159 = vadd.f32 %v2130, 1.0
    %v2160 = vadd.f32 %v2132, 1.0
    %v2161 = vadd.f32 %v2134, 1.0
    %v2162 = vadd.f32 %v2136, 1.0
    %v2163 = vadd.f32 %v2138, 1.0
    %v2164 = vadd.f32 %v2140, 1.0
    %v2165 = vadd.f32 %v2142, 1.0
    %v2166 = vadd.f32 %v2144, 1.0
    %v2167 = vadd.f32 %v2146, 1.0
    %v2168 = vadd.f32 %v2148, 1.0
    %v2169 = vadd.f32 %v2150, 1.0
    %v2170 = vadd.f32 %v2152, 1.0
    %v2171 = vadd.f32 %v2154, 1.0
    %v2172 = vadd.f32 %v2156, 1.0
    %v2173 = vrcp.pop %v2157
    %v2174 = vmul.f32 1.0, %v2173
    %v2175 = vrcp.pop %v2158
    %v2176 = vmul.f32 1.0, %v2175
    %v2177 = vrcp.pop %v2159
    %v2178 = vmul.f32 1.0, %v2177
    %v2179 = vrcp.pop %v2160
    %v2180 = vmul.f32 1.0, %v2179
    %v2181 = vrcp.pop %v2161
    %v2182 = vmul.f32 1.0, %v2181
    %v2183 = vrcp.pop %v2162
    %v2184 = vmul.f32 1.0, %v2183
    %v2185 = vrcp.pop %v2163
    %v2186 = vmul.f32 1.0, %v2185
    %v2187 = vrcp.pop %v2164
    %v2188 = vmul.f32 1.0, %v2187
    %v2189 = vrcp.pop %v2165
    %v2190 = vmul.f32 1.0, %v2189
    %v2191 = vrcp.pop %v2166
    %v2192 = vmul.f32 1.0, %v2191
    %v2193 = vrcp.pop %v2167
    %v2194 = vmul.f32 1.0, %v2193
    %v2195 = vrcp.pop %v2168
    %v2196 = vmul.f32 1.0, %v2195
    %v2197 = vrcp.pop %v2169
    %v2198 = vmul.f32 1.0, %v2197
    %v2199 = vrcp.pop %v2170
    %v2200 = vmul.f32 1.0, %v2199
    %v2201 = vrcp.pop %v2171
    %v2202 = vmul.f32 1.0, %v2201
    %v2203 = vrcp.pop %v2172
    %v2204 = vmul.f32 1.0, %v2203
    %v2205 = vmul.f32 %v2022, %v2174
    %v2206 = vmul.f32 %v2024, %v2176
    %v2207 = vmul.f32 %v2075, %v2178
    %v2208 = vmul.f32 %v2077, %v2180
    %v2209 = vmul.f32 %v2026, %v2182
    %v2210 = vmul.f32 %v2028, %v2184
    %v2211 = vmul.f32 %v2079, %v2186
    %v2212 = vmul.f32 %v2081, %v2188
    %v2213 = vmul.f32 %v2032, %v2190
    %v2214 = vmul.f32 %v2034, %v2192
    %v2215 = vmul.f32 %v2085, %v2194
    %v2216 = vmul.f32 %v2087, %v2196
    %v2217 = vmul.f32 %v2036, %v2198
    %v2218 = vmul.f32 %v2038, %v2200
    %v2219 = vmul.f32 %v2089, %v2202
    %v2220 = vmul.f32 %v2091, %v2204
    %v2221 = vpack.c.bf16 %v2209, %v2205
    %v2222 = vpack.c.bf16 %v2210, %v2206
    %v2223 = vpack.c.bf16 %v2211, %v2207
    %v2224 = vpack.c.bf16 %v2212, %v2208
    %v2225 = vpack.c.bf16 %v2217, %v2213
    %v2226 = vpack.c.bf16 %v2218, %v2214
    %v2227 = vpack.c.bf16 %v2219, %v2215
    %v2228 = vpack.c.bf16 %v2220, %v2216
    %v2229 = vld [vmem:[#allocation11] sm:$0xf]
    %v2230 = vld [vmem:[#allocation11 + $0x4] sm:$0xf]
    %v2231 = vld [vmem:[#allocation11 + $0x8] sm:$0xf]
    %v2232 = vld [vmem:[#allocation11 + $0xc] sm:$0xf]
    %v2233 = vld [vmem:[#allocation11 + $0x10] sm:$0xf]
    %v2234 = vld [vmem:[#allocation11 + $0x14] sm:$0xf]
    %v2235 = vld [vmem:[#allocation11 + $0x18] sm:$0xf]
    %v2236 = vld [vmem:[#allocation11 + $0x1c] sm:$0xf]
    %v2237 = vld [vmem:[#allocation11 + $0x20] sm:$0xf]
    %v2238 = vld [vmem:[#allocation11 + $0x24] sm:$0xf]
    %v2239 = vld [vmem:[#allocation11 + $0x28] sm:$0xf]
    %v2240 = vld [vmem:[#allocation11 + $0x2c] sm:$0xf]
    %v2241 = vld [vmem:[#allocation11 + $0x30] sm:$0xf]
    %v2242 = vld [vmem:[#allocation11 + $0x34] sm:$0xf]
    %v2243 = vld [vmem:[#allocation11 + $0x38] sm:$0xf]
    %v2244 = vld [vmem:[#allocation11 + $0x3c] sm:$0xf]
    %v2245 = vld [vmem:[#allocation11 + $0x40] sm:$0xf]
    %v2246 = vld [vmem:[#allocation11 + $0x44] sm:$0xf]
    %v2247 = vld [vmem:[#allocation11 + $0x48] sm:$0xf]
    %v2248 = vld [vmem:[#allocation11 + $0x4c] sm:$0xf]
    %v2249 = vld [vmem:[#allocation11 + $0x50] sm:$0xf]
    %v2250 = vld [vmem:[#allocation11 + $0x54] sm:$0xf]
    %v2251 = vld [vmem:[#allocation11 + $0x58] sm:$0xf]
    %v2252 = vld [vmem:[#allocation11 + $0x5c] sm:$0xf]
    %v2253 = vld [vmem:[#allocation11 + $0x60] sm:$0xf]
    %v2254 = vld [vmem:[#allocation11 + $0x64] sm:$0xf]
    %v2255 = vld [vmem:[#allocation11 + $0x68] sm:$0xf]
    %v2256 = vld [vmem:[#allocation11 + $0x6c] sm:$0xf]
    %v2257 = vld [vmem:[#allocation11 + $0x70] sm:$0xf]
    %v2258 = vld [vmem:[#allocation11 + $0x74] sm:$0xf]
    %v2259 = vld [vmem:[#allocation11 + $0x78] sm:$0xf]
    %v2260 = vld [vmem:[#allocation11 + $0x7c] sm:$0xf]
    %v2261 = vld [vmem:[#allocation11 + $0x80] sm:$0xf]
    %v2262 = vld [vmem:[#allocation11 + $0x84] sm:$0xf]
    %v2263 = vld [vmem:[#allocation11 + $0x88] sm:$0xf]
    %v2264 = vld [vmem:[#allocation11 + $0x8c] sm:$0xf]
    %v2265 = vld [vmem:[#allocation11 + $0x90] sm:$0xf]
    %v2266 = vld [vmem:[#allocation11 + $0x94] sm:$0xf]
    %v2267 = vld [vmem:[#allocation11 + $0x98] sm:$0xf]
    %v2268 = vld [vmem:[#allocation11 + $0x9c] sm:$0xf]
    %v2269 = vld [vmem:[#allocation11 + $0xa0] sm:$0xf]
    %v2270 = vld [vmem:[#allocation11 + $0xa4] sm:$0xf]
    %v2271 = vld [vmem:[#allocation11 + $0xa8] sm:$0xf]
    %v2272 = vld [vmem:[#allocation11 + $0xac] sm:$0xf]
    %v2273 = vld [vmem:[#allocation11 + $0xb0] sm:$0xf]
    %v2274 = vld [vmem:[#allocation11 + $0xb4] sm:$0xf]
    %v2275 = vld [vmem:[#allocation11 + $0xb8] sm:$0xf]
    %v2276 = vld [vmem:[#allocation11 + $0xbc] sm:$0xf]
    %v2277 = vld [vmem:[#allocation11 + $0xc0] sm:$0xf]
    %v2278 = vld [vmem:[#allocation11 + $0xc4] sm:$0xf]
    %v2279 = vld [vmem:[#allocation11 + $0xc8] sm:$0xf]
    %v2280 = vld [vmem:[#allocation11 + $0xcc] sm:$0xf]
    %v2281 = vld [vmem:[#allocation11 + $0xd0] sm:$0xf]
    %v2282 = vld [vmem:[#allocation11 + $0xd4] sm:$0xf]
    %v2283 = vld [vmem:[#allocation11 + $0xd8] sm:$0xf]
    %v2284 = vld [vmem:[#allocation11 + $0xdc] sm:$0xf]
    %v2285 = vld [vmem:[#allocation11 + $0xe0] sm:$0xf]
    %v2286 = vld [vmem:[#allocation11 + $0xe4] sm:$0xf]
    %v2287 = vld [vmem:[#allocation11 + $0xe8] sm:$0xf]
    %v2288 = vld [vmem:[#allocation11 + $0xec] sm:$0xf]
    %v2289 = vld [vmem:[#allocation11 + $0xf0] sm:$0xf]
    %v2290 = vld [vmem:[#allocation11 + $0xf4] sm:$0xf]
    %v2291 = vld [vmem:[#allocation11 + $0xf8] sm:$0xf]
    %v2292 = vld [vmem:[#allocation11 + $0xfc] sm:$0xf]
    %v2293 = vld [vmem:[%s8] sm:$0x1]
    %v2295 = vlaneseq
    %v2296 = vshrl.u32 %v2295, 7
    %v2297 = vsub.s32 0, %v2296
    %v2298 = vrot.slane %v2293, %v2297
    %v2364 = vunpack.c.l.b16 %v2229
    %v2365 = vunpack.c.l.b16 %v2230
    %v2366 = vunpack.c.l.b16 %v2231
    %v2367 = vunpack.c.l.b16 %v2232
    %v2368 = vunpack.c.l.b16 %v2233
    %v2369 = vunpack.c.l.b16 %v2234
    %v2370 = vunpack.c.l.b16 %v2235
    %v2371 = vunpack.c.l.b16 %v2236
    %v2372 = vunpack.c.l.b16 %v2237
    %v2373 = vunpack.c.l.b16 %v2238
    %v2374 = vunpack.c.l.b16 %v2239
    %v2375 = vunpack.c.l.b16 %v2240
    %v2376 = vunpack.c.l.b16 %v2241
    %v2377 = vunpack.c.l.b16 %v2242
    %v2378 = vunpack.c.l.b16 %v2243
    %v2379 = vunpack.c.l.b16 %v2244
    %v2380 = vunpack.c.l.b16 %v2245
    %v2381 = vunpack.c.l.b16 %v2246
    %v2382 = vunpack.c.l.b16 %v2247
    %v2383 = vunpack.c.l.b16 %v2248
    %v2384 = vunpack.c.l.b16 %v2249
    %v2385 = vunpack.c.l.b16 %v2250
    %v2386 = vunpack.c.l.b16 %v2251
    %v2387 = vunpack.c.l.b16 %v2252
    %v2388 = vunpack.c.l.b16 %v2253
    %v2389 = vunpack.c.l.b16 %v2254
    %v2390 = vunpack.c.l.b16 %v2255
    %v2391 = vunpack.c.l.b16 %v2256
    %v2392 = vunpack.c.l.b16 %v2257
    %v2393 = vunpack.c.l.b16 %v2258
    %v2394 = vunpack.c.l.b16 %v2259
    %v2395 = vunpack.c.l.b16 %v2260
    %v2396 = vunpack.c.l.b16 %v2261
    %v2397 = vunpack.c.l.b16 %v2262
    %v2398 = vunpack.c.l.b16 %v2263
    %v2399 = vunpack.c.l.b16 %v2264
    %v2400 = vunpack.c.l.b16 %v2265
    %v2401 = vunpack.c.l.b16 %v2266
    %v2402 = vunpack.c.l.b16 %v2267
    %v2403 = vunpack.c.l.b16 %v2268
    %v2404 = vunpack.c.l.b16 %v2269
    %v2405 = vunpack.c.l.b16 %v2270
    %v2406 = vunpack.c.l.b16 %v2271
    %v2407 = vunpack.c.l.b16 %v2272
    %v2408 = vunpack.c.l.b16 %v2273
    %v2409 = vunpack.c.l.b16 %v2274
    %v2410 = vunpack.c.l.b16 %v2275
    %v2411 = vunpack.c.l.b16 %v2276
    %v2412 = vunpack.c.l.b16 %v2277
    %v2413 = vunpack.c.l.b16 %v2278
    %v2414 = vunpack.c.l.b16 %v2279
    %v2415 = vunpack.c.l.b16 %v2280
    %v2416 = vunpack.c.l.b16 %v2281
    %v2417 = vunpack.c.l.b16 %v2282
    %v2418 = vunpack.c.l.b16 %v2283
    %v2419 = vunpack.c.l.b16 %v2284
    %v2420 = vunpack.c.l.b16 %v2285
    %v2421 = vunpack.c.l.b16 %v2286
    %v2422 = vunpack.c.l.b16 %v2287
    %v2423 = vunpack.c.l.b16 %v2288
    %v2424 = vunpack.c.l.b16 %v2289
    %v2425 = vunpack.c.l.b16 %v2290
    %v2426 = vunpack.c.l.b16 %v2291
    %v2427 = vunpack.c.l.b16 %v2292
    %v2428 = vpack.c.b16 %v2365, %v2364
    %v2429 = vpack.c.b16 %v2367, %v2366
    %v2430 = vpack.c.b16 %v2369, %v2368
    %v2431 = vpack.c.b16 %v2371, %v2370
    %v2432 = vpack.c.b16 %v2373, %v2372
    %v2433 = vpack.c.b16 %v2375, %v2374
    %v2434 = vpack.c.b16 %v2377, %v2376
    %v2435 = vpack.c.b16 %v2379, %v2378
    %v2436 = vpack.c.b16 %v2381, %v2380
    %v2437 = vpack.c.b16 %v2383, %v2382
    %v2438 = vpack.c.b16 %v2385, %v2384
    %v2439 = vpack.c.b16 %v2387, %v2386
    %v2440 = vpack.c.b16 %v2389, %v2388
    %v2441 = vpack.c.b16 %v2391, %v2390
    %v2442 = vpack.c.b16 %v2393, %v2392
    %v2443 = vpack.c.b16 %v2395, %v2394
    %v2444 = vpack.c.b16 %v2397, %v2396
    %v2445 = vpack.c.b16 %v2399, %v2398
    %v2446 = vpack.c.b16 %v2401, %v2400
    %v2447 = vpack.c.b16 %v2403, %v2402
    %v2448 = vpack.c.b16 %v2405, %v2404
    %v2449 = vpack.c.b16 %v2407, %v2406
    %v2450 = vpack.c.b16 %v2409, %v2408
    %v2451 = vpack.c.b16 %v2411, %v2410
    %v2452 = vpack.c.b16 %v2413, %v2412
    %v2453 = vpack.c.b16 %v2415, %v2414
    %v2454 = vpack.c.b16 %v2417, %v2416
    %v2455 = vpack.c.b16 %v2419, %v2418
    %v2456 = vpack.c.b16 %v2421, %v2420
    %v2457 = vpack.c.b16 %v2423, %v2422
    %v2458 = vpack.c.b16 %v2425, %v2424
    %v2459 = vpack.c.b16 %v2427, %v2426
    %2492 = vmatprep.subr.bf16.mxu0 0
    %2493 = vmatpush1.bf16.msra.mxu0 %v2435
    %2494 = vmatprep.subr.bf16.mxu0 0
    %2495 = vmatpush1.bf16.msra.mxu0 %v2434
    %2496 = vmatprep.subr.bf16.mxu0 0
    %2497 = vmatpush1.bf16.msra.mxu0 %v2433
    %2498 = vmatprep.subr.bf16.mxu0 0
    %2499 = vmatpush1.bf16.msra.mxu0 %v2432
    %2500 = vmatprep.subr.bf16.mxu0 0
    %2501 = vmatpush1.bf16.msra.mxu0 %v2431
    %2502 = vmatprep.subr.bf16.mxu0 0
    %2503 = vmatpush1.bf16.msra.mxu0 %v2430
    %2504 = vmatprep.subr.bf16.mxu0 0
    %2505 = vmatpush1.bf16.msra.mxu0 %v2429
    %2506 = vmatprep.subr.bf16.mxu0 0
    %2507 = vmatpush1.bf16.msra.mxu0 %v2428
    %2508 = vmatprep.subr.bf16.mxu0 0
    %2509 = vmatpush2.bf16.msra.mxu0 %v2443
    %2510 = vmatprep.subr.bf16.mxu0 0
    %2511 = vmatpush2.bf16.msra.mxu0 %v2442
    %2512 = vmatprep.subr.bf16.mxu0 0
    %2513 = vmatpush2.bf16.msra.mxu0 %v2441
    %2514 = vmatprep.subr.bf16.mxu0 0
    %2515 = vmatpush2.bf16.msra.mxu0 %v2440
    %2516 = vmatprep.subr.bf16.mxu0 0
    %2517 = vmatpush2.bf16.msra.mxu0 %v2439
    %2518 = vmatprep.subr.bf16.mxu0 0
    %2519 = vmatpush2.bf16.msra.mxu0 %v2438
    %2520 = vmatprep.subr.bf16.mxu0 0
    %2521 = vmatpush2.bf16.msra.mxu0 %v2437
    %2522 = vmatprep.subr.bf16.mxu0 0
    %2523 = vmatpush2.bf16.msra.mxu0 %v2436
    %2524 = vmatprep.mubr.bf16.mxu0 %v2222
    %2525 = vmatmul.mubr.bf16.gmra.mxu0 %v2221
    %v2526 = vpop.f32.mrf.mxu0
    %v2527 = vadd.f32 %v2298, %v2526
    %v2528 = vpop.f32.mrf.mxu0
    %v2529 = vpop.f32.mrf.mxu0
    %v2530 = vadd.f32 %v2298, %v2529
    %v2531 = vpop.f32.mrf.mxu0
    %2532 = vmatprep.mubr.bf16.mxu0 %v2226
    %2533 = vmatmul.mubr.bf16.gmra.mxu0 %v2225
    %v2534 = vpop.f32.mrf.mxu0
    %v2535 = vadd.f32 %v2298, %v2534
    %v2536 = vpop.f32.mrf.mxu0
    %v2537 = vpop.f32.mrf.mxu0
    %v2538 = vadd.f32 %v2298, %v2537
    %v2539 = vpop.f32.mrf.mxu0
    %2540 = vdwg.mxu0
    %2541 = vmatprep.subr.bf16.mxu0 0
    %2542 = vmatpush1.bf16.msra.mxu0 %v2451
    %2543 = vmatprep.subr.bf16.mxu0 0
    %2544 = vmatpush1.bf16.msra.mxu0 %v2450
    %2545 = vmatprep.subr.bf16.mxu0 0
    %2546 = vmatpush1.bf16.msra.mxu0 %v2449
    %2547 = vmatprep.subr.bf16.mxu0 0
    %2548 = vmatpush1.bf16.msra.mxu0 %v2448
    %2549 = vmatprep.subr.bf16.mxu0 0
    %2550 = vmatpush1.bf16.msra.mxu0 %v2447
    %2551 = vmatprep.subr.bf16.mxu0 0
    %2552 = vmatpush1.bf16.msra.mxu0 %v2446
    %2553 = vmatprep.subr.bf16.mxu0 0
    %2554 = vmatpush1.bf16.msra.mxu0 %v2445
    %2555 = vmatprep.subr.bf16.mxu0 0
    %2556 = vmatpush1.bf16.msra.mxu0 %v2444
    %2557 = vmatprep.subr.bf16.mxu0 0
    %2558 = vmatpush2.bf16.msra.mxu0 %v2459
    %2559 = vmatprep.subr.bf16.mxu0 0
    %2560 = vmatpush2.bf16.msra.mxu0 %v2458
    %2561 = vmatprep.subr.bf16.mxu0 0
    %2562 = vmatpush2.bf16.msra.mxu0 %v2457
    %2563 = vmatprep.subr.bf16.mxu0 0
    %2564 = vmatpush2.bf16.msra.mxu0 %v2456
    %2565 = vmatprep.subr.bf16.mxu0 0
    %2566 = vmatpush2.bf16.msra.mxu0 %v2455
    %2567 = vmatprep.subr.bf16.mxu0 0
    %2568 = vmatpush2.bf16.msra.mxu0 %v2454
    %2569 = vmatprep.subr.bf16.mxu0 0
    %2570 = vmatpush2.bf16.msra.mxu0 %v2453
    %2571 = vmatprep.subr.bf16.mxu0 0
    %2572 = vmatpush2.bf16.msra.mxu0 %v2452
    %2573 = vmatprep.mubr.bf16.mxu0 %v2224
    %2574 = vmatmul.mubr.bf16.gmra.mxu0 %v2223
    %v2575 = vpop.f32.mrf.mxu0
    %v2576 = vadd.f32 %v2527, %v2575
    %v2577 = vpop.f32.mrf.mxu0
    %v2578 = vpop.f32.mrf.mxu0
    %v2579 = vadd.f32 %v2530, %v2578
    %v2580 = vpop.f32.mrf.mxu0
    %2581 = vmatprep.mubr.bf16.mxu0 %v2228
    %2582 = vmatmul.mubr.bf16.gmra.mxu0 %v2227
    %v2583 = vpop.f32.mrf.mxu0
    %v2584 = vadd.f32 %v2535, %v2583
    %v2585 = vpop.f32.mrf.mxu0
    %v2586 = vpop.f32.mrf.mxu0
    %v2587 = vadd.f32 %v2538, %v2586
    %v2588 = vpop.f32.mrf.mxu0
    %2589 = vdwg.mxu0
    %v2590 = vadd.f32 %v1723, %v2576
    %v2591 = vadd.f32 %v1724, %v2579
    %v2592 = vadd.f32 %v1725, %v2584
    %v2593 = vadd.f32 %v1726, %v2587
    %2594 = vst [vmem:[#allocation13] sm:$0xff] %v2590
    %2595 = vst [vmem:[#allocation13 + $0x8] sm:$0xff] %v2591
    %2596 = vst [vmem:[#allocation13 + $0x10] sm:$0xff] %v2592
    %2597 = vst [vmem:[#allocation13 + $0x18] sm:$0xff] %v2593
    // Predicated region
    $region62: #{residual_attention_block.1} parent=1 // pred_check
      _
    $region63: #{residual_attention_block.1} parent=1 // pred_check_branch
      %2599 = sbr.rel (0) target = $region65
    $region64: #{residual_attention_block.1} parent=1 // pred_region
      %s2601 = ssub.s32 512, 512
      %2602 = vsyncadd [#allocation4], %s2601
      %s2603 = sshll.u32 [#allocation13], 4
      %s2604 = int_to_ptr.vmem [resolvable:$true] %s2603
      %2609 = dma.vmem_to_hbm [thread:$0]  %s2604, 512, %s9, [#allocation4], 128, 128, 8
    $region65: #{residual_attention_block.1} parent=1 // pred_fallthru
      _
    // Predicated region
    $region66: #{residual_attention_block.1} parent=1 // pred_check
      _
    $region67: #{residual_attention_block.1} parent=1 // pred_check_branch
      %2611 = sbr.rel (0) target = $region69
    $region68: #{residual_attention_block.1} parent=1 // pred_region
      %2612 = dma.done [#allocation4], 512
    $region69: #{residual_attention_block.1} parent=1 // pred_fallthru
      _
    %2613 = vsyncpa [#allocation3], 1
    %2614 = vsyncpa [#allocation6], 1
    %2615 = vsyncpa [#allocation9], 1
    %2616 = vsyncpa [#allocation12], 1
    %2617 = vsyncpa [#allocation4], 1

</llo_original>
